<compile_context>
chip_gen: v7x
topology: tpu7x:2x2x1
jax: 0.10.0
libtpu: 0.0.40
codegen_flags: <defaults>
</compile_context>

<pallas_src>
import math
from functools import partial

import jax
import jax.numpy as jnp
from jax.experimental import pallas as pl
from jax.experimental.pallas import tpu as pltpu


# Lane offsets inside the packed side tensor ([1, 2048] f32).
_B1, _B2, _B3, _B4, _B5, _BH, _WC2, _BC2 = 0, 768, 1152, 1408, 1536, 1664, 1792, 1920
_SIDE_LANES = 2048


# -----------------------------------------------------------------------------
# Pallas kernel: whole forward as a lane-dense MLP chain + fused heads.
# -----------------------------------------------------------------------------
def _actor_critic_kernel(
    x_ref,                       # [TB, 48]   bf16  (flattened 6x7 board, zero-padded 42->48)
    w1_ref,                      # [48, 768]  bf16  (folded Conv2d(1,64,4))
    w2_ref,                      # [768, 384] bf16  (folded Conv2d(64,64,2), (c,h,w) flatten)
    w3_ref,                      # [384, 256] bf16
    w4_ref,                      # [256, 128] bf16
    w5_ref,                      # [128, 128] bf16  (cols 64:128 zero -> lane-dense feat)
    wh_ref,                      # [128, 128] bf16  (rows 64:128 zero; cols 0:7 actor, 7:39 critic1)
    side_ref,                    # [1, 2048]  f32   packed: b1|b2|b3|b4|b5|bh|wc2|bc2
    out_ref,                     # [TB, 128]  f32   (cols 0:7 actor probs, col 7 critic value)
):
    f32 = jnp.float32
    bf16 = jnp.bfloat16

    # Static, 128-aligned lane slices of the packed side tensor (no tile-boundary crossings).
    b1 = side_ref[:, _B1:_B1 + 768]
    b2 = side_ref[:, _B2:_B2 + 384]
    b3 = side_ref[:, _B3:_B3 + 256]
    b4 = side_ref[:, _B4:_B4 + 128]
    b5 = side_ref[:, _B5:_B5 + 128]
    bh = side_ref[:, _BH:_BH + 128]
    wc2 = side_ref[:, _WC2:_WC2 + 128]
    bc2 = side_ref[:, _BC2:_BC2 + 1]

    def dense_relu(a, w_ref, b):
        h = jnp.dot(a, w_ref[...], preferred_element_type=f32) + b
        return jnp.maximum(h, 0.0).astype(bf16)

    h1 = dense_relu(x_ref[...], w1_ref, b1)        # [TB, 768]  conv1 + ReLU
    h2 = dense_relu(h1, w2_ref, b2)                # [TB, 384]  conv2 + flatten + ReLU
    h3 = dense_relu(h2, w3_ref, b3)                # [TB, 256]
    h4 = dense_relu(h3, w4_ref, b4)                # [TB, 128]
    feat = dense_relu(h4, w5_ref, b5)              # [TB, 128] (lanes 64:128 exactly 0)

    # Fused heads: one matmul producing actor logits (cols 0:7) and critic hidden (7:39).
    hh = jnp.dot(feat, wh_ref[...], preferred_element_type=f32) + bh   # [TB,128] f32

    tb = hh.shape[0]
    lane = jax.lax.broadcasted_iota(jnp.int32, (tb, 128), 1)
    amask = lane < 7

    # Actor softmax over the 7 real logit lanes (masked, stays lane-dense).
    logits = jnp.where(amask, hh, jnp.float32(-1e30))
    m = jnp.max(logits, axis=-1, keepdims=True)
    e = jnp.where(amask, jnp.exp(logits - m), 0.0)
    s = jnp.sum(e, axis=-1, keepdims=True)
    r = pl.reciprocal(s, approx=True)              # EUP slot
    r = r * (2.0 - s * r)                          # one Newton step -> ~exact f32 divide
    probs = e * r                                  # cols >= 7 are exactly 0

    # Critic: ReLU of critic-hidden lanes, weighted lane-reduce (wc2 is zero outside 7:39).
    c1 = jnp.maximum(hh, 0.0)
    crit = jnp.sum(c1 * wc2, axis=-1, keepdims=True) + bc2             # [TB,1]

    out_ref[...] = probs + jnp.where(lane == 7, crit, 0.0)


# -----------------------------------------------------------------------------
# Parameter init (mirrors PyTorch __init__ semantics / layouts).
# -----------------------------------------------------------------------------
def init_params(key):
    """Parameters in PyTorch layouts (conv: [out,in,kh,kw], linear: [out,in])."""
    ks = jax.random.split(key, 8)

    def kaiming(k, shape, fan_in):
        std = math.sqrt(2.0 / fan_in)
        return jax.random.normal(k, shape, jnp.float32) * std

    p = {}
    p["conv1_w"] = kaiming(ks[0], (64, 1, 4, 4), 1 * 4 * 4)
    p["conv1_b"] = jnp.zeros((64,), jnp.float32)
    p["conv2_w"] = kaiming(ks[1], (64, 64, 2, 2), 64 * 2 * 2)
    p["conv2_b"] = jnp.zeros((64,), jnp.float32)
    p["lin1_w"] = kaiming(ks[2], (256, 384), 384)
    p["lin1_b"] = jnp.zeros((256,), jnp.float32)
    p["lin2_w"] = kaiming(ks[3], (128, 256), 256)
    p["lin2_b"] = jnp.zeros((128,), jnp.float32)
    p["lin3_w"] = kaiming(ks[4], (64, 128), 128)
    p["lin3_b"] = jnp.zeros((64,), jnp.float32)
    p["actor_w"] = jnp.zeros((7, 64), jnp.float32)       # zero-init per reference
    p["actor_b"] = jnp.zeros((7,), jnp.float32)
    p["critic1_w"] = kaiming(ks[5], (32, 64), 64)
    p["critic1_b"] = jnp.zeros((32,), jnp.float32)
    p["critic2_w"] = jnp.zeros((1, 32), jnp.float32)     # zero-init per reference
    p["critic2_b"] = jnp.zeros((1,), jnp.float32)
    return p


def prepare_kernel_weights(p):
    """One-time weight plumbing: fold convs into dense matrices, pad/fuse heads, pack biases."""
    f32 = jnp.float32
    bf16 = jnp.bfloat16

    # Conv2d(1,64,4) as dense [48,768]: apply conv to the 42-pixel identity basis.
    # Input index = ih*7+iw (padded to 48); output index = (oi*4+oj)*64 + c.
    eye1 = jnp.eye(42, dtype=f32).reshape(42, 1, 6, 7)
    o1 = jax.lax.conv_general_dilated(
        eye1, p["conv1_w"], (1, 1), "VALID",
        dimension_numbers=("NCHW", "OIHW", "NCHW"))                  # [42, 64, 3, 4]
    w1d = o1.transpose(0, 2, 3, 1).reshape(42, 768)                  # pos-major x channel
    w1d = jnp.pad(w1d, ((0, 6), (0, 0)))                             # [48, 768]
    b1d = jnp.tile(p["conv1_b"], (12,)).reshape(768)                 # bias[pos*64+c] = conv1_b[c]

    # Conv2d(64,64,2) as dense [768,384]: basis over h1 features (pos*64+c), output
    # flattened in PyTorch (c,h,w) order so Linear(384,256) weights apply directly.
    eye2 = jnp.eye(768, dtype=f32).reshape(768, 3, 4, 64).transpose(0, 3, 1, 2)  # [768,64,3,4]
    o2 = jax.lax.conv_general_dilated(
        eye2, p["conv2_w"], (1, 1), "VALID",
        dimension_numbers=("NCHW", "OIHW", "NCHW"))                  # [768, 64, 2, 3]
    w2d = o2.reshape(768, 384)
    b2d = jnp.repeat(p["conv2_b"], 6)                                # [384]

    # Lane-dense tail: w5 padded to [128,128] (extra output cols zero).
    w5 = jnp.zeros((128, 128), f32).at[:, :64].set(p["lin3_w"].T)
    b5 = jnp.zeros((128,), f32).at[:64].set(p["lin3_b"])

    # Fused heads padded to [128,128]: rows 64:128 zero; cols = [actor(7)|critic1(32)|zeros].
    wh = jnp.zeros((128, 128), f32)
    wh = wh.at[:64, 0:7].set(p["actor_w"].T)
    wh = wh.at[:64, 7:39].set(p["critic1_w"].T)
    bh = jnp.zeros((128,), f32)
    bh = bh.at[0:7].set(p["actor_b"])
    bh = bh.at[7:39].set(p["critic1_b"])
    wc2 = jnp.zeros((128,), f32).at[7:39].set(p["critic2_w"][0])

    # Pack all small f32 side tensors into one [1, 2048] lane-aligned slab.
    side = jnp.zeros((1, _SIDE_LANES), f32)
    side = side.at[0, _B1:_B1 + 768].set(b1d)
    side = side.at[0, _B2:_B2 + 384].set(b2d)
    side = side.at[0, _B3:_B3 + 256].set(p["lin1_b"])
    side = side.at[0, _B4:_B4 + 128].set(p["lin2_b"])
    side = side.at[0, _B5:_B5 + 128].set(b5)
    side = side.at[0, _BH:_BH + 128].set(bh)
    side = side.at[0, _WC2:_WC2 + 128].set(wc2)
    side = side.at[0, _BC2:_BC2 + 1].set(p["critic2_b"])

    return dict(
        w1=w1d.astype(bf16),
        w2=w2d.astype(bf16),
        w3=p["lin1_w"].T.astype(bf16),
        w4=p["lin2_w"].T.astype(bf16),
        w5=w5.astype(bf16),
        wh=wh.astype(bf16),
        side=side,
    )


# -----------------------------------------------------------------------------
# Wrapper: batch-gridded pallas_call.
# -----------------------------------------------------------------------------
def _round_up(n, m):
    return (n + m - 1) // m * m


def _cdiv(a, b):
    return (a + b - 1) // b


@partial(jax.jit, static_argnames=("tb",))
def actor_critic_forward(x, kw, tb=1024):
    # x: [N, 1, 6, 7] float32 (NCHW, PyTorch convention)
    N = x.shape[0]
    x42 = x.reshape(N, 42).astype(jnp.float32)

    # Tile policy (perf review):
    #  * balance the tile across cdiv(N, tb) steps -> padding waste < 8 rows per tile
    #  * for N >= 64 force >= 2 grid steps so both v7x TensorCores get work
    #    (harmless extra serial step on single-TC v5e/v6e)
    steps = max(_cdiv(max(N, 1), tb), 1)
    if N >= 64:
        steps = max(steps, 2)
    tb_eff = _round_up(_cdiv(max(N, 1), steps), 8)
    n_pad = tb_eff * steps

    xin = jnp.pad(x42, ((0, n_pad - N), (0, 6))).astype(jnp.bfloat16)   # [n_pad, 48]

    def full(shape):
        return pl.BlockSpec(shape, lambda i: (0, 0))

    in_specs = [
        pl.BlockSpec((tb_eff, 48), lambda i: (i, 0)),
        full((48, 768)),
        full((768, 384)),
        full((384, 256)),
        full((256, 128)),
        full((128, 128)),
        full((128, 128)),
        full((1, _SIDE_LANES)),
    ]
    out_spec = pl.BlockSpec((tb_eff, 128), lambda i: (i, 0))

    flops = 2 * n_pad * (48 * 768 + 768 * 384 + 384 * 256 + 256 * 128 + 128 * 128 + 128 * 128)
    w_bytes = 2 * (48 * 768 + 768 * 384 + 384 * 256 + 256 * 128 + 128 * 128 + 128 * 128) \
        + 4 * _SIDE_LANES
    bytes_accessed = n_pad * 48 * 2 + n_pad * 128 * 4 + w_bytes

    out = pl.pallas_call(
        _actor_critic_kernel,
        out_shape=jax.ShapeDtypeStruct((n_pad, 128), jnp.float32),
        grid=(steps,),
        in_specs=in_specs,
        out_specs=out_spec,
        compiler_params=pltpu.CompilerParams(
            dimension_semantics=("parallel",),
            vmem_limit_bytes=32 * 1024 * 1024,
        ),
        cost_estimate=pl.CostEstimate(
            flops=flops, transcendentals=8 * n_pad, bytes_accessed=bytes_accessed),
    )(
        xin,
        kw["w1"], kw["w2"], kw["w3"], kw["w4"], kw["w5"], kw["wh"], kw["side"],
    )

    actor = out[:N, 0:7]      # softmax probabilities
    critic = out[:N, 7:8]     # critic value
    return actor, critic


# -----------------------------------------------------------------------------
# Pure-JAX reference (f32) for verification.
# -----------------------------------------------------------------------------
def reference_forward(p, x):
    dn = ("NCHW", "OIHW", "NCHW")
    h = jax.lax.conv_general_dilated(x, p["conv1_w"], (1, 1), "VALID",
                                     dimension_numbers=dn) + p["conv1_b"].reshape(1, 64, 1, 1)
    h = jnp.maximum(h, 0.0)
    h = jax.lax.conv_general_dilated(h, p["conv2_w"], (1, 1), "VALID",
                                     dimension_numbers=dn) + p["conv2_b"].reshape(1, 64, 1, 1)
    h = h.reshape(h.shape[0], -1)                       # PyTorch Flatten(1): (c,h,w) order
    h = jnp.maximum(h, 0.0)
    h = jnp.maximum(h @ p["lin1_w"].T + p["lin1_b"], 0.0)
    h = jnp.maximum(h @ p["lin2_w"].T + p["lin2_b"], 0.0)
    feat = jnp.maximum(h @ p["lin3_w"].T + p["lin3_b"], 0.0)
    logits = feat @ p["actor_w"].T + p["actor_b"]
    probs = jax.nn.softmax(logits, axis=1)
    c = jnp.maximum(feat @ p["critic1_w"].T + p["critic1_b"], 0.0)
    value = c @ p["critic2_w"].T + p["critic2_b"]
    return probs, value


if __name__ == "__main__":
    key = jax.random.PRNGKey(0)
    k_param, k_x, k_a, k_ab, k_c2 = jax.random.split(key, 5)

    params = init_params(k_param)
    kweights = prepare_kernel_weights(params)

    # Small deterministic input consistent with the module: batch=2, 1x6x7 board.
    x = jax.random.normal(k_x, (2, 1, 6, 7), jnp.float32)

    # --- Run with the reference (zero-init heads): actor must be uniform, critic zero.
    actor, critic = actor_critic_forward(x, kweights)
    jax.block_until_ready((actor, critic))
    assert actor.shape == (2, 7) and critic.shape == (2, 1)
    assert bool(jnp.allclose(actor, 1.0 / 7.0, atol=1e-3))
    assert bool(jnp.allclose(critic, 0.0, atol=1e-6))
    assert bool(jnp.all(jnp.isfinite(actor))) and bool(jnp.all(jnp.isfinite(critic)))

    # --- Run again with non-zero heads to exercise the full folded chain vs. f32 reference.
    # (bf16 activations between layers -> ~1e-2-level agreement with the f32 reference.)
    params2 = dict(params)
    params2["actor_w"] = jax.random.normal(k_a, (7, 64), jnp.float32) * math.sqrt(2.0 / 64)
    params2["actor_b"] = jax.random.normal(k_ab, (7,), jnp.float32) * 0.1
    params2["critic2_w"] = jax.random.normal(k_c2, (1, 32), jnp.float32) * math.sqrt(1.0 / 32)
    params2["critic2_b"] = jnp.full((1,), 0.25, jnp.float32)
    kweights2 = prepare_kernel_weights(params2)

    actor2, critic2 = actor_critic_forward(x, kweights2)
    ref_actor, ref_critic = reference_forward(params2, x)
    jax.block_until_ready((actor2, critic2, ref_actor, ref_critic))
    assert bool(jnp.allclose(jnp.sum(actor2, axis=1), 1.0, atol=1e-3))
    assert bool(jnp.allclose(actor2, ref_actor, atol=5e-2))
    assert bool(jnp.allclose(critic2, ref_critic, atol=1e-1))

    print("KERNEL_OK")
</pallas_src>

<mosaic_0001>
module attributes {stable_mosaic.version = 11 : i64} {
  func.func @_actor_critic_kernel(%arg0: i32, %arg1: memref<8x48xbf16, #tpu.memory_space<vmem>>, %arg2: memref<48x768xbf16, #tpu.memory_space<vmem>>, %arg3: memref<768x384xbf16, #tpu.memory_space<vmem>>, %arg4: memref<384x256xbf16, #tpu.memory_space<vmem>>, %arg5: memref<256x128xbf16, #tpu.memory_space<vmem>>, %arg6: memref<128x128xbf16, #tpu.memory_space<vmem>>, %arg7: memref<128x128xbf16, #tpu.memory_space<vmem>>, %arg8: memref<1x2048xf32, #tpu.memory_space<vmem>>, %arg9: memref<8x128xf32, #tpu.memory_space<vmem>>) attributes {dimension_semantics = [#tpu.dimension_semantics<parallel>], iteration_bounds = array<i64: 1>, scalar_prefetch = 0 : i64, scratch_operands = 0 : i64, tpu.core_type = #tpu.core_type<tc>, window_params = [{transform_indices = @transform_0, window_bounds = array<i64: 8, 48>}, {pipeline_mode = #tpu.pipeline_mode<synchronous>, transform_indices = @transform_1, window_bounds = array<i64: 48, 768>}, {pipeline_mode = #tpu.pipeline_mode<synchronous>, transform_indices = @transform_2, window_bounds = array<i64: 768, 384>}, {pipeline_mode = #tpu.pipeline_mode<synchronous>, transform_indices = @transform_3, window_bounds = array<i64: 384, 256>}, {pipeline_mode = #tpu.pipeline_mode<synchronous>, transform_indices = @transform_4, window_bounds = array<i64: 256, 128>}, {pipeline_mode = #tpu.pipeline_mode<synchronous>, transform_indices = @transform_5, window_bounds = array<i64: 128, 128>}, {pipeline_mode = #tpu.pipeline_mode<synchronous>, transform_indices = @transform_6, window_bounds = array<i64: 128, 128>}, {pipeline_mode = #tpu.pipeline_mode<synchronous>, transform_indices = @transform_7, window_bounds = array<i64: 1, 2048>}, {transform_indices = @transform_8, window_bounds = array<i64: 8, 128>}]} {
    %c0 = arith.constant 0 : index
    %c0_0 = arith.constant 0 : index
    %0 = vector.load %arg8[%c0, %c0_0] : memref<1x2048xf32, #tpu.memory_space<vmem>>, vector<1x768xf32>
    %c0_1 = arith.constant 0 : index
    %c768 = arith.constant 768 : index
    %1 = vector.load %arg8[%c0_1, %c768] : memref<1x2048xf32, #tpu.memory_space<vmem>>, vector<1x384xf32>
    %c0_2 = arith.constant 0 : index
    %c1152 = arith.constant 1152 : index
    %2 = vector.load %arg8[%c0_2, %c1152] : memref<1x2048xf32, #tpu.memory_space<vmem>>, vector<1x256xf32>
    %c0_3 = arith.constant 0 : index
    %c1408 = arith.constant 1408 : index
    %3 = vector.load %arg8[%c0_3, %c1408] : memref<1x2048xf32, #tpu.memory_space<vmem>>, vector<1x128xf32>
    %c0_4 = arith.constant 0 : index
    %c1536 = arith.constant 1536 : index
    %4 = vector.load %arg8[%c0_4, %c1536] : memref<1x2048xf32, #tpu.memory_space<vmem>>, vector<1x128xf32>
    %c0_5 = arith.constant 0 : index
    %c1664 = arith.constant 1664 : index
    %5 = vector.load %arg8[%c0_5, %c1664] : memref<1x2048xf32, #tpu.memory_space<vmem>>, vector<1x128xf32>
    %c0_6 = arith.constant 0 : index
    %c1792 = arith.constant 1792 : index
    %6 = vector.load %arg8[%c0_6, %c1792] : memref<1x2048xf32, #tpu.memory_space<vmem>>, vector<1x128xf32>
    %c0_7 = arith.constant 0 : index
    %c1920 = arith.constant 1920 : index
    %7 = vector.load %arg8[%c0_7, %c1920] : memref<1x2048xf32, #tpu.memory_space<vmem>>, vector<1x1xf32>
    %c0_8 = arith.constant 0 : index
    %c0_9 = arith.constant 0 : index
    %8 = vector.load %arg1[%c0_8, %c0_9] : memref<8x48xbf16, #tpu.memory_space<vmem>>, vector<8x48xbf16>
    %c0_10 = arith.constant 0 : index
    %c0_11 = arith.constant 0 : index
    %9 = vector.load %arg2[%c0_10, %c0_11] : memref<48x768xbf16, #tpu.memory_space<vmem>>, vector<48x768xbf16>
    %cst = arith.constant dense<0.000000e+00> : vector<8x768xf32>
    %10 = tpu.matmul %8, %9, %cst {dimension_numbers = #tpu.dot_dimension_numbers<[1], [0], [0], [1], [0, 0, 1, 1], [], []>} : vector<8x48xbf16>, vector<48x768xbf16>, vector<8x768xf32> -> vector<8x768xf32>
    %11 = vector.broadcast %0 : vector<1x768xf32> to vector<8x768xf32>
    %12 = arith.addf %10, %11 : vector<8x768xf32>
    %cst_12 = arith.constant 0.000000e+00 : f32
    %13 = vector.broadcast %cst_12 : f32 to vector<8x768xf32>
    %14 = arith.maximumf %12, %13 : vector<8x768xf32>
    %15 = arith.truncf %14 : vector<8x768xf32> to vector<8x768xbf16>
    %c0_13 = arith.constant 0 : index
    %c0_14 = arith.constant 0 : index
    %16 = vector.load %arg3[%c0_13, %c0_14] : memref<768x384xbf16, #tpu.memory_space<vmem>>, vector<768x384xbf16>
    %cst_15 = arith.constant dense<0.000000e+00> : vector<8x384xf32>
    %17 = tpu.matmul %15, %16, %cst_15 {dimension_numbers = #tpu.dot_dimension_numbers<[1], [0], [0], [1], [0, 0, 1, 1], [], []>} : vector<8x768xbf16>, vector<768x384xbf16>, vector<8x384xf32> -> vector<8x384xf32>
    %18 = vector.broadcast %1 : vector<1x384xf32> to vector<8x384xf32>
    %19 = arith.addf %17, %18 : vector<8x384xf32>
    %cst_16 = arith.constant 0.000000e+00 : f32
    %20 = vector.broadcast %cst_16 : f32 to vector<8x384xf32>
    %21 = arith.maximumf %19, %20 : vector<8x384xf32>
    %22 = arith.truncf %21 : vector<8x384xf32> to vector<8x384xbf16>
    %c0_17 = arith.constant 0 : index
    %c0_18 = arith.constant 0 : index
    %23 = vector.load %arg4[%c0_17, %c0_18] : memref<384x256xbf16, #tpu.memory_space<vmem>>, vector<384x256xbf16>
    %cst_19 = arith.constant dense<0.000000e+00> : vector<8x256xf32>
    %24 = tpu.matmul %22, %23, %cst_19 {dimension_numbers = #tpu.dot_dimension_numbers<[1], [0], [0], [1], [0, 0, 1, 1], [], []>} : vector<8x384xbf16>, vector<384x256xbf16>, vector<8x256xf32> -> vector<8x256xf32>
    %25 = vector.broadcast %2 : vector<1x256xf32> to vector<8x256xf32>
    %26 = arith.addf %24, %25 : vector<8x256xf32>
    %cst_20 = arith.constant 0.000000e+00 : f32
    %27 = vector.broadcast %cst_20 : f32 to vector<8x256xf32>
    %28 = arith.maximumf %26, %27 : vector<8x256xf32>
    %29 = arith.truncf %28 : vector<8x256xf32> to vector<8x256xbf16>
    %c0_21 = arith.constant 0 : index
    %c0_22 = arith.constant 0 : index
    %30 = vector.load %arg5[%c0_21, %c0_22] : memref<256x128xbf16, #tpu.memory_space<vmem>>, vector<256x128xbf16>
    %cst_23 = arith.constant dense<0.000000e+00> : vector<8x128xf32>
    %31 = tpu.matmul %29, %30, %cst_23 {dimension_numbers = #tpu.dot_dimension_numbers<[1], [0], [0], [1], [0, 0, 1, 1], [], []>} : vector<8x256xbf16>, vector<256x128xbf16>, vector<8x128xf32> -> vector<8x128xf32>
    %32 = vector.broadcast %3 : vector<1x128xf32> to vector<8x128xf32>
    %33 = arith.addf %31, %32 : vector<8x128xf32>
    %cst_24 = arith.constant 0.000000e+00 : f32
    %34 = vector.broadcast %cst_24 : f32 to vector<8x128xf32>
    %35 = arith.maximumf %33, %34 : vector<8x128xf32>
    %36 = arith.truncf %35 : vector<8x128xf32> to vector<8x128xbf16>
    %c0_25 = arith.constant 0 : index
    %c0_26 = arith.constant 0 : index
    %37 = vector.load %arg6[%c0_25, %c0_26] : memref<128x128xbf16, #tpu.memory_space<vmem>>, vector<128x128xbf16>
    %cst_27 = arith.constant dense<0.000000e+00> : vector<8x128xf32>
    %38 = tpu.matmul %36, %37, %cst_27 {dimension_numbers = #tpu.dot_dimension_numbers<[1], [0], [0], [1], [0, 0, 1, 1], [], []>} : vector<8x128xbf16>, vector<128x128xbf16>, vector<8x128xf32> -> vector<8x128xf32>
    %39 = vector.broadcast %4 : vector<1x128xf32> to vector<8x128xf32>
    %40 = arith.addf %38, %39 : vector<8x128xf32>
    %cst_28 = arith.constant 0.000000e+00 : f32
    %41 = vector.broadcast %cst_28 : f32 to vector<8x128xf32>
    %42 = arith.maximumf %40, %41 : vector<8x128xf32>
    %43 = arith.truncf %42 : vector<8x128xf32> to vector<8x128xbf16>
    %c0_29 = arith.constant 0 : index
    %c0_30 = arith.constant 0 : index
    %44 = vector.load %arg7[%c0_29, %c0_30] : memref<128x128xbf16, #tpu.memory_space<vmem>>, vector<128x128xbf16>
    %cst_31 = arith.constant dense<0.000000e+00> : vector<8x128xf32>
    %45 = tpu.matmul %43, %44, %cst_31 {dimension_numbers = #tpu.dot_dimension_numbers<[1], [0], [0], [1], [0, 0, 1, 1], [], []>} : vector<8x128xbf16>, vector<128x128xbf16>, vector<8x128xf32> -> vector<8x128xf32>
    %46 = vector.broadcast %5 : vector<1x128xf32> to vector<8x128xf32>
    %47 = arith.addf %45, %46 : vector<8x128xf32>
    %48 = tpu.iota {dimensions = array<i32: 1>} : vector<8x128xi32>
    %c7_i32 = arith.constant 7 : i32
    %49 = vector.broadcast %c7_i32 : i32 to vector<8x128xi32>
    %50 = arith.cmpi slt, %48, %49 : vector<8x128xi32>
    %cst_32 = arith.constant -1.000000e+30 : f32
    %51 = vector.broadcast %cst_32 : f32 to vector<8x128xf32>
    %52 = arith.select %50, %47, %51 : vector<8x128xi1>, vector<8x128xf32>
    %cst_33 = arith.constant dense<0xFF800000> : vector<8xf32>
    %53 = vector.multi_reduction <maximumf>, %52, %cst_33 [1] : vector<8x128xf32> to vector<8xf32>
    %54 = vector.shape_cast %53 : vector<8xf32> to vector<8x1xf32>
    %55 = vector.broadcast %54 : vector<8x1xf32> to vector<8x128xf32>
    %56 = arith.subf %52, %55 : vector<8x128xf32>
    %57 = math.exp %56 : vector<8x128xf32>
    %cst_34 = arith.constant 0.000000e+00 : f32
    %58 = vector.broadcast %cst_34 : f32 to vector<8x128xf32>
    %59 = arith.select %50, %57, %58 : vector<8x128xi1>, vector<8x128xf32>
    %cst_35 = arith.constant dense<0.000000e+00> : vector<8xf32>
    %60 = vector.multi_reduction <add>, %59, %cst_35 [1] : vector<8x128xf32> to vector<8xf32>
    %61 = vector.shape_cast %60 : vector<8xf32> to vector<8x1xf32>
    %62 = tpu.reciprocal %61 {approx = true} : vector<8x1xf32> -> vector<8x1xf32>
    %63 = arith.mulf %61, %62 : vector<8x1xf32>
    %cst_36 = arith.constant 2.000000e+00 : f32
    %64 = vector.broadcast %cst_36 : f32 to vector<8x1xf32>
    %65 = arith.subf %64, %63 : vector<8x1xf32>
    %66 = arith.mulf %62, %65 : vector<8x1xf32>
    %67 = vector.broadcast %66 : vector<8x1xf32> to vector<8x128xf32>
    %68 = arith.mulf %59, %67 : vector<8x128xf32>
    %cst_37 = arith.constant 0.000000e+00 : f32
    %69 = vector.broadcast %cst_37 : f32 to vector<8x128xf32>
    %70 = arith.maximumf %47, %69 : vector<8x128xf32>
    %71 = vector.broadcast %6 : vector<1x128xf32> to vector<8x128xf32>
    %72 = arith.mulf %70, %71 : vector<8x128xf32>
    %cst_38 = arith.constant dense<0.000000e+00> : vector<8xf32>
    %73 = vector.multi_reduction <add>, %72, %cst_38 [1] : vector<8x128xf32> to vector<8xf32>
    %74 = vector.shape_cast %73 : vector<8xf32> to vector<8x1xf32>
    %75 = vector.broadcast %7 : vector<1x1xf32> to vector<8x1xf32>
    %76 = arith.addf %74, %75 : vector<8x1xf32>
    %c7_i32_39 = arith.constant 7 : i32
    %77 = vector.broadcast %c7_i32_39 : i32 to vector<8x128xi32>
    %78 = arith.cmpi eq, %48, %77 : vector<8x128xi32>
    %cst_40 = arith.constant 0.000000e+00 : f32
    %79 = vector.shape_cast %76 : vector<8x1xf32> to vector<8x1xf32>
    %80 = vector.broadcast %79 : vector<8x1xf32> to vector<8x128xf32>
    %81 = vector.broadcast %cst_40 : f32 to vector<8x128xf32>
    %82 = arith.select %78, %80, %81 : vector<8x128xi1>, vector<8x128xf32>
    %83 = arith.addf %68, %82 : vector<8x128xf32>
    %c0_41 = arith.constant 0 : index
    %c0_42 = arith.constant 0 : index
    %84 = vector.load %arg9[%c0_41, %c0_42] : memref<8x128xf32, #tpu.memory_space<vmem>>, vector<8x128xf32>
    tpu.vector_store %arg9[%c0_41, %c0_42], %83 {strides = array<i32>} : memref<8x128xf32, #tpu.memory_space<vmem>>, vector<8x128xf32>,
    return
  }
  func.func @transform_0(%arg0: i32) -> (i32, i32) {
    %c0_i32 = arith.constant 0 : i32
    %c0_i32_0 = arith.constant 0 : i32
    return %arg0, %c0_i32 : i32, i32
  }
  func.func @transform_1(%arg0: i32) -> (i32, i32) {
    %c0_i32 = arith.constant 0 : i32
    %c0_i32_0 = arith.constant 0 : i32
    %c0_i32_1 = arith.constant 0 : i32
    return %c0_i32, %c0_i32_0 : i32, i32
  }
  func.func @transform_2(%arg0: i32) -> (i32, i32) {
    %c0_i32 = arith.constant 0 : i32
    %c0_i32_0 = arith.constant 0 : i32
    %c0_i32_1 = arith.constant 0 : i32
    return %c0_i32, %c0_i32_0 : i32, i32
  }
  func.func @transform_3(%arg0: i32) -> (i32, i32) {
    %c0_i32 = arith.constant 0 : i32
    %c0_i32_0 = arith.constant 0 : i32
    %c0_i32_1 = arith.constant 0 : i32
    return %c0_i32, %c0_i32_0 : i32, i32
  }
  func.func @transform_4(%arg0: i32) -> (i32, i32) {
    %c0_i32 = arith.constant 0 : i32
    %c0_i32_0 = arith.constant 0 : i32
    %c0_i32_1 = arith.constant 0 : i32
    return %c0_i32, %c0_i32_0 : i32, i32
  }
  func.func @transform_5(%arg0: i32) -> (i32, i32) {
    %c0_i32 = arith.constant 0 : i32
    %c0_i32_0 = arith.constant 0 : i32
    %c0_i32_1 = arith.constant 0 : i32
    return %c0_i32, %c0_i32_0 : i32, i32
  }
  func.func @transform_6(%arg0: i32) -> (i32, i32) {
    %c0_i32 = arith.constant 0 : i32
    %c0_i32_0 = arith.constant 0 : i32
    %c0_i32_1 = arith.constant 0 : i32
    return %c0_i32, %c0_i32_0 : i32, i32
  }
  func.func @transform_7(%arg0: i32) -> (i32, i32) {
    %c0_i32 = arith.constant 0 : i32
    %c0_i32_0 = arith.constant 0 : i32
    %c0_i32_1 = arith.constant 0 : i32
    return %c0_i32, %c0_i32_0 : i32, i32
  }
  func.func @transform_8(%arg0: i32) -> (i32, i32) {
    %c0_i32 = arith.constant 0 : i32
    %c0_i32_0 = arith.constant 0 : i32
    return %arg0, %c0_i32 : i32, i32
  }
}

</mosaic_0001>

<llo_original>
// kernel: actor_critic_forward.1
$region0: #{actor_critic_forward.1}
  #allocation0 [shape = 'u32[]', space=smem, size = 0x4, offset = 0x4, fixed_abs, tag = 'smem constant byte address 0x4 - core index']
  #allocation1 [shape = 'u32[144,128]{1,0:T(1,128)}', space=vmem, size = 0x12000, scoped, tag = 'internal scratch']
  %s0 = inlined_call_operand.vmem [shape: bf16[8,48], index: 0, kind: input, shape index: {}]
  %s1 = inlined_call_operand.hbm [shape: bf16[48,768], index: 1, kind: input, shape index: {}]
  %s2 = inlined_call_operand.hbm [shape: bf16[768,384], index: 2, kind: input, shape index: {}]
  %s3 = inlined_call_operand.hbm [shape: bf16[384,256], index: 3, kind: input, shape index: {}]
  %s4 = inlined_call_operand.hbm [shape: bf16[256,128], index: 4, kind: input, shape index: {}]
  %s5 = inlined_call_operand.hbm [shape: bf16[128,128], index: 5, kind: input, shape index: {}]
  %s6 = inlined_call_operand.hbm [shape: bf16[128,128], index: 6, kind: input, shape index: {}]
  %s7 = inlined_call_operand.vmem [shape: f32[1,2048], index: 7, kind: input, shape index: {}]
  %s8 = inlined_call_operand.vmem [shape: f32[8,128], index: 8, kind: output, shape index: {}]
  %s9 = sld [smem:[#allocation0]]
  $region66: #{actor_critic_forward.1} parent=0
    _
  %s11 = ssub.s32 1, %s9
  %s12 = scalar_select 0, %s11, %s9
  $region1: #{actor_critic_forward.1} parent=0
    #allocation2 [shape = 'u8[73728]{0}', space=vmem, size = 0x12000, scoped, tag = 'input window, operand 1, single buffered']
    #allocation3 [shape = 's32[1]{0}', space=sflag, size = 0x4, scoped, tag = 'scoped memory for actor_critic_forward.1']
    #allocation4 [shape = 'u8[589824]{0}', space=vmem, size = 0x90000, scoped, tag = 'input window, operand 2, single buffered']
    #allocation5 [shape = 's32[1]{0}', space=sflag, size = 0x4, scoped, tag = 'scoped memory for actor_critic_forward.1']
    #allocation6 [shape = 'u8[196608]{0}', space=vmem, size = 0x30000, scoped, tag = 'input window, operand 3, single buffered']
    #allocation7 [shape = 'u8[65536]{0}', space=vmem, size = 0x10000, scoped, tag = 'input window, operand 4, single buffered']
    #allocation8 [shape = 's32[1]{0}', space=sflag, size = 0x4, scoped, tag = 'scoped memory for actor_critic_forward.1']
    #allocation9 [shape = 'u8[32768]{0}', space=vmem, size = 0x8000, scoped, tag = 'input window, operand 5, single buffered']
    #allocation10 [shape = 'u8[32768]{0}', space=vmem, size = 0x8000, scoped, tag = 'input window, operand 6, single buffered']
    #allocation11 [shape = 's32[1]{0}', space=sflag, size = 0x4, scoped, tag = 'scoped memory for actor_critic_forward.1']
    %13 = vsyncpa [#allocation3], 0
    %14 = vsyncpa [#allocation5], 0
    %15 = vsyncpa [#allocation8], 0
    %16 = vsyncpa [#allocation11], 0
    // Predicated region
    $region2: #{actor_critic_forward.1} parent=1 // pred_check
      _
    $region3: #{actor_critic_forward.1} parent=1 // pred_check_branch
      %18 = sbr.rel (0) target = $region5
    $region4: #{actor_critic_forward.1} parent=1 // pred_region
      _
    $region5: #{actor_critic_forward.1} parent=1 // pred_fallthru
      _
    // Predicated region
    $region6: #{actor_critic_forward.1} parent=1 // pred_check
      _
    $region7: #{actor_critic_forward.1} parent=1 // pred_check_branch
      %20 = sbr.rel (0) target = $region9
    $region8: #{actor_critic_forward.1} parent=1 // pred_region
      %s22 = ssub.s32 2304, 2304
      %23 = vsyncadd [#allocation3], %s22
      %s24 = sshll.u32 [#allocation2], 4
      %s25 = int_to_ptr.vmem [resolvable:$true] %s24
      %30 = dma.hbm_to_vmem [thread:$0]  %s1, 2304, %s25, [#allocation3], 384, 384, 24
    $region9: #{actor_critic_forward.1} parent=1 // pred_fallthru
      _
    // Predicated region
    $region10: #{actor_critic_forward.1} parent=1 // pred_check
      _
    $region11: #{actor_critic_forward.1} parent=1 // pred_check_branch
      %32 = sbr.rel (0) target = $region13
    $region12: #{actor_critic_forward.1} parent=1 // pred_region
      %s34 = ssub.s32 18432, 18432
      %35 = vsyncadd [#allocation5], %s34
      %s36 = sshll.u32 [#allocation4], 4
      %s37 = int_to_ptr.vmem [resolvable:$true] %s36
      %42 = dma.hbm_to_vmem [thread:$0]  %s2, 18432, %s37, [#allocation5], 192, 192, 12
    $region13: #{actor_critic_forward.1} parent=1 // pred_fallthru
      _
    // Predicated region
    $region14: #{actor_critic_forward.1} parent=1 // pred_check
      _
    $region15: #{actor_critic_forward.1} parent=1 // pred_check_branch
      %44 = sbr.rel (0) target = $region17
    $region16: #{actor_critic_forward.1} parent=1 // pred_region
      %s46 = ssub.s32 6144, 6144
      %47 = vsyncadd [#allocation5], %s46
      %s48 = sshll.u32 [#allocation6], 4
      %s49 = int_to_ptr.vmem [resolvable:$true] %s48
      %54 = dma.hbm_to_vmem [thread:$0]  %s3, 6144, %s49, [#allocation5], 128, 128, 8
    $region17: #{actor_critic_forward.1} parent=1 // pred_fallthru
      _
    // Predicated region
    $region18: #{actor_critic_forward.1} parent=1 // pred_check
      _
    $region19: #{actor_critic_forward.1} parent=1 // pred_check_branch
      %56 = sbr.rel (0) target = $region21
    $region20: #{actor_critic_forward.1} parent=1 // pred_region
      %s58 = ssub.s32 2048, 2048
      %59 = vsyncadd [#allocation8], %s58
      %s60 = sshll.u32 [#allocation7], 4
      %s61 = int_to_ptr.vmem [resolvable:$true] %s60
      %66 = dma.hbm_to_vmem [thread:$0]  %s4, 2048, %s61, [#allocation8], 64, 64, 4
    $region21: #{actor_critic_forward.1} parent=1 // pred_fallthru
      _
    // Predicated region
    $region22: #{actor_critic_forward.1} parent=1 // pred_check
      _
    $region23: #{actor_critic_forward.1} parent=1 // pred_check_branch
      %68 = sbr.rel (0) target = $region25
    $region24: #{actor_critic_forward.1} parent=1 // pred_region
      %s70 = ssub.s32 1024, 1024
      %71 = vsyncadd [#allocation8], %s70
      %s72 = sshll.u32 [#allocation9], 4
      %s73 = int_to_ptr.vmem [resolvable:$true] %s72
      %78 = dma.hbm_to_vmem [thread:$0]  %s5, 1024, %s73, [#allocation8], 64, 64, 4
    $region25: #{actor_critic_forward.1} parent=1 // pred_fallthru
      _
    // Predicated region
    $region26: #{actor_critic_forward.1} parent=1 // pred_check
      _
    $region27: #{actor_critic_forward.1} parent=1 // pred_check_branch
      %80 = sbr.rel (0) target = $region29
    $region28: #{actor_critic_forward.1} parent=1 // pred_region
      %s82 = ssub.s32 1024, 1024
      %83 = vsyncadd [#allocation11], %s82
      %s84 = sshll.u32 [#allocation10], 4
      %s85 = int_to_ptr.vmem [resolvable:$true] %s84
      %90 = dma.hbm_to_vmem [thread:$0]  %s6, 1024, %s85, [#allocation11], 64, 64, 4
    $region29: #{actor_critic_forward.1} parent=1 // pred_fallthru
      _
    // Predicated region
    $region30: #{actor_critic_forward.1} parent=1 // pred_check
      _
    $region31: #{actor_critic_forward.1} parent=1 // pred_check_branch
      %92 = sbr.rel (0) target = $region33
    $region32: #{actor_critic_forward.1} parent=1 // pred_region
      _
    $region33: #{actor_critic_forward.1} parent=1 // pred_fallthru
      _
    // Predicated region
    $region34: #{actor_critic_forward.1} parent=1 // pred_check
      _
    $region35: #{actor_critic_forward.1} parent=1 // pred_check_branch
      %94 = sbr.rel (0) target = $region37
    $region36: #{actor_critic_forward.1} parent=1 // pred_region
      %95 = dma.done [#allocation3], 2304
    $region37: #{actor_critic_forward.1} parent=1 // pred_fallthru
      _
    // Predicated region
    $region38: #{actor_critic_forward.1} parent=1 // pred_check
      _
    $region39: #{actor_critic_forward.1} parent=1 // pred_check_branch
      %97 = sbr.rel (0) target = $region41
    $region40: #{actor_critic_forward.1} parent=1 // pred_region
      %98 = dma.done [#allocation5], 18432
    $region41: #{actor_critic_forward.1} parent=1 // pred_fallthru
      _
    // Predicated region
    $region42: #{actor_critic_forward.1} parent=1 // pred_check
      _
    $region43: #{actor_critic_forward.1} parent=1 // pred_check_branch
      %100 = sbr.rel (0) target = $region45
    $region44: #{actor_critic_forward.1} parent=1 // pred_region
      %101 = dma.done [#allocation5], 6144
    $region45: #{actor_critic_forward.1} parent=1 // pred_fallthru
      _
    // Predicated region
    $region46: #{actor_critic_forward.1} parent=1 // pred_check
      _
    $region47: #{actor_critic_forward.1} parent=1 // pred_check_branch
      %103 = sbr.rel (0) target = $region49
    $region48: #{actor_critic_forward.1} parent=1 // pred_region
      %104 = dma.done [#allocation8], 2048
    $region49: #{actor_critic_forward.1} parent=1 // pred_fallthru
      _
    // Predicated region
    $region50: #{actor_critic_forward.1} parent=1 // pred_check
      _
    $region51: #{actor_critic_forward.1} parent=1 // pred_check_branch
      %106 = sbr.rel (0) target = $region53
    $region52: #{actor_critic_forward.1} parent=1 // pred_region
      %107 = dma.done [#allocation8], 1024
    $region53: #{actor_critic_forward.1} parent=1 // pred_fallthru
      _
    // Predicated region
    $region54: #{actor_critic_forward.1} parent=1 // pred_check
      _
    $region55: #{actor_critic_forward.1} parent=1 // pred_check_branch
      %109 = sbr.rel (0) target = $region57
    $region56: #{actor_critic_forward.1} parent=1 // pred_region
      %110 = dma.done [#allocation11], 1024
    $region57: #{actor_critic_forward.1} parent=1 // pred_fallthru
      _
    %v112 = vld [vmem:[%s7] sm:$0x3f]
    %v113 = vld [vmem:[%s7 + $0x6] sm:$0x7]
    %v114 = vld [vmem:[%s7 + $0x9] sm:$0x3]
    %v115 = vld [vmem:[%s7 + $0xb] sm:$0x1]
    %v116 = vld [vmem:[%s7 + $0xc] sm:$0x1]
    %v117 = vld [vmem:[%s7 + $0xd] sm:$0x1]
    %v118 = vld [vmem:[%s7 + $0xe] sm:$0x1]
    %v119 = vld [vmem:[%s7 + $0xf] sm:$0x1]
    %v120 = vld [vmem:[%s0] sm:$0xf]
    %v121 = vld [vmem:[#allocation2] sm:$0xff]
    %v122 = vld [vmem:[#allocation2 + $0x8] sm:$0xff]
    %v123 = vld [vmem:[#allocation2 + $0x10] sm:$0xff]
    %v124 = vld [vmem:[#allocation2 + $0x18] sm:$0xff]
    %v125 = vld [vmem:[#allocation2 + $0x20] sm:$0xff]
    %v126 = vld [vmem:[#allocation2 + $0x28] sm:$0xff]
    %v127 = vld [vmem:[#allocation2 + $0x30] sm:$0xff]
    %v128 = vld [vmem:[#allocation2 + $0x38] sm:$0xff]
    %v129 = vld [vmem:[#allocation2 + $0x40] sm:$0xff]
    %v130 = vld [vmem:[#allocation2 + $0x48] sm:$0xff]
    %v131 = vld [vmem:[#allocation2 + $0x50] sm:$0xff]
    %v132 = vld [vmem:[#allocation2 + $0x58] sm:$0xff]
    %v133 = vld [vmem:[#allocation2 + $0x60] sm:$0xff]
    %v134 = vld [vmem:[#allocation2 + $0x68] sm:$0xff]
    %v135 = vld [vmem:[#allocation2 + $0x70] sm:$0xff]
    %v136 = vld [vmem:[#allocation2 + $0x78] sm:$0xff]
    %v137 = vld [vmem:[#allocation2 + $0x80] sm:$0xff]
    %v138 = vld [vmem:[#allocation2 + $0x88] sm:$0xff]
    %v140 = vlaneseq
    %v141 = vshrl.u32 %v140, 7
    %v142 = vsub.s32 0, %v141
    %v143 = vrot.slane %v112, %v142
    %v144 = vlaneseq
    %v145 = vshrl.u32 %v144, 7
    %v146 = vsub.s32 1, %v145
    %v147 = vrot.slane %v112, %v146
    %v148 = vlaneseq
    %v149 = vshrl.u32 %v148, 7
    %v150 = vsub.s32 2, %v149
    %v151 = vrot.slane %v112, %v150
    %v152 = vlaneseq
    %v153 = vshrl.u32 %v152, 7
    %v154 = vsub.s32 3, %v153
    %v155 = vrot.slane %v112, %v154
    %v156 = vlaneseq
    %v157 = vshrl.u32 %v156, 7
    %v158 = vsub.s32 4, %v157
    %v159 = vrot.slane %v112, %v158
    %v160 = vlaneseq
    %v161 = vshrl.u32 %v160, 7
    %v162 = vsub.s32 5, %v161
    %v163 = vrot.slane %v112, %v162
    %v188 = vunpack.c.l.b16 %v121
    %v189 = vunpack.c.h.b16 %v121
    %v190 = vunpack.c.l.b16 %v122
    %v191 = vunpack.c.h.b16 %v122
    %v192 = vunpack.c.l.b16 %v123
    %v193 = vunpack.c.h.b16 %v123
    %v194 = vunpack.c.l.b16 %v124
    %v195 = vunpack.c.h.b16 %v124
    %v196 = vunpack.c.l.b16 %v125
    %v197 = vunpack.c.h.b16 %v125
    %v198 = vunpack.c.l.b16 %v126
    %v199 = vunpack.c.h.b16 %v126
    %v200 = vunpack.c.l.b16 %v127
    %v201 = vunpack.c.h.b16 %v127
    %v202 = vunpack.c.l.b16 %v128
    %v203 = vunpack.c.h.b16 %v128
    %v204 = vunpack.c.l.b16 %v129
    %v205 = vunpack.c.h.b16 %v129
    %v206 = vunpack.c.l.b16 %v130
    %v207 = vunpack.c.h.b16 %v130
    %v208 = vunpack.c.l.b16 %v131
    %v209 = vunpack.c.h.b16 %v131
    %v210 = vunpack.c.l.b16 %v132
    %v211 = vunpack.c.h.b16 %v132
    %v212 = vunpack.c.l.b16 %v133
    %v213 = vunpack.c.h.b16 %v133
    %v214 = vunpack.c.l.b16 %v134
    %v215 = vunpack.c.h.b16 %v134
    %v216 = vunpack.c.l.b16 %v135
    %v217 = vunpack.c.h.b16 %v135
    %v218 = vunpack.c.l.b16 %v136
    %v219 = vunpack.c.h.b16 %v136
    %v220 = vunpack.c.l.b16 %v137
    %v221 = vunpack.c.h.b16 %v137
    %v222 = vunpack.c.l.b16 %v138
    %v223 = vunpack.c.h.b16 %v138
    %v224 = vpack.c.b16 %v194, %v188
    %v225 = vpack.c.b16 %v195, %v189
    %v226 = vpack.c.b16 %v196, %v190
    %v227 = vpack.c.b16 %v197, %v191
    %v228 = vpack.c.b16 %v198, %v192
    %v229 = vpack.c.b16 %v199, %v193
    %v230 = vpack.c.b16 %v206, %v200
    %v231 = vpack.c.b16 %v207, %v201
    %v232 = vpack.c.b16 %v208, %v202
    %v233 = vpack.c.b16 %v209, %v203
    %v234 = vpack.c.b16 %v210, %v204
    %v235 = vpack.c.b16 %v211, %v205
    %v236 = vpack.c.b16 %v218, %v212
    %v237 = vpack.c.b16 %v219, %v213
    %v238 = vpack.c.b16 %v220, %v214
    %v239 = vpack.c.b16 %v221, %v215
    %v240 = vpack.c.b16 %v222, %v216
    %v241 = vpack.c.b16 %v223, %v217
    %vm260 = vcmask 392192
    %v262 = vsel %vm260, %v120, 0
    %264 = vmatprep.subr.bf16.mxu0 %v225
    %265 = vmatpush1.bf16.msra.mxu0 %v224
    %266 = vmatprep.subr.bf16.mxu0 %v231
    %267 = vmatpush1.bf16.msra.mxu0 %v230
    %268 = vmatprep.subr.bf16.mxu0 %v237
    %269 = vmatpush1.bf16.msra.mxu0 %v236
    %270 = vmatprep.subr.bf16.mxu0 0
    %271 = vmatpush1.bf16.msra.mxu0 0
    %272 = vmatprep.subr.bf16.mxu0 0
    %273 = vmatpush1.bf16.msra.mxu0 0
    %274 = vmatprep.subr.bf16.mxu0 0
    %275 = vmatpush1.bf16.msra.mxu0 0
    %276 = vmatprep.subr.bf16.mxu0 0
    %277 = vmatpush1.bf16.msra.mxu0 0
    %278 = vmatprep.subr.bf16.mxu0 0
    %279 = vmatpush1.bf16.msra.mxu0 0
    %280 = vmatprep.subr.bf16.mxu0 0
    %281 = vmatpush1.bf16.msra.mxu0 0
    %282 = vmatprep.subr.bf16.mxu0 0
    %283 = vmatpush1.bf16.msra.mxu0 0
    %284 = vmatprep.subr.bf16.mxu0 0
    %285 = vmatpush1.bf16.msra.mxu0 0
    %286 = vmatprep.subr.bf16.mxu0 0
    %287 = vmatpush1.bf16.msra.mxu0 0
    %288 = vmatprep.subr.bf16.mxu0 0
    %289 = vmatpush1.bf16.msra.mxu0 0
    %290 = vmatprep.subr.bf16.mxu0 0
    %291 = vmatpush1.bf16.msra.mxu0 0
    %292 = vmatprep.subr.bf16.mxu0 0
    %293 = vmatpush1.bf16.msra.mxu0 0
    %294 = vmatprep.subr.bf16.mxu0 0
    %295 = vmatpush1.bf16.msra.mxu0 0
    %296 = vmatprep.mubr.bf16.mxu0 0
    %297 = vmatmul.mubr.bf16.gmra.mrb[0].mxu0 %v262
    %v298 = vpop.f32.mrb[0].mxu0
    %v299 = vadd.f32 %v143, %v298
    %v300 = vpop.f32.mrb[0].mxu0
    %v301 = vadd.f32 %v147, %v300
    %v302 = vpop.f32.mrb[0].mxu0
    %v303 = vpop.f32.mrb[0].mxu0
    %304 = vdwg.mxu0
    %305 = vmatprep.subr.bf16.mxu0 %v227
    %306 = vmatpush1.bf16.msra.mxu0 %v226
    %307 = vmatprep.subr.bf16.mxu0 %v233
    %308 = vmatpush1.bf16.msra.mxu0 %v232
    %309 = vmatprep.subr.bf16.mxu0 %v239
    %310 = vmatpush1.bf16.msra.mxu0 %v238
    %311 = vmatprep.subr.bf16.mxu0 0
    %312 = vmatpush1.bf16.msra.mxu0 0
    %313 = vmatprep.subr.bf16.mxu0 0
    %314 = vmatpush1.bf16.msra.mxu0 0
    %315 = vmatprep.subr.bf16.mxu0 0
    %316 = vmatpush1.bf16.msra.mxu0 0
    %317 = vmatprep.subr.bf16.mxu0 0
    %318 = vmatpush1.bf16.msra.mxu0 0
    %319 = vmatprep.subr.bf16.mxu0 0
    %320 = vmatpush1.bf16.msra.mxu0 0
    %321 = vmatprep.subr.bf16.mxu0 0
    %322 = vmatpush1.bf16.msra.mxu0 0
    %323 = vmatprep.subr.bf16.mxu0 0
    %324 = vmatpush1.bf16.msra.mxu0 0
    %325 = vmatprep.subr.bf16.mxu0 0
    %326 = vmatpush1.bf16.msra.mxu0 0
    %327 = vmatprep.subr.bf16.mxu0 0
    %328 = vmatpush1.bf16.msra.mxu0 0
    %329 = vmatprep.subr.bf16.mxu0 0
    %330 = vmatpush1.bf16.msra.mxu0 0
    %331 = vmatprep.subr.bf16.mxu0 0
    %332 = vmatpush1.bf16.msra.mxu0 0
    %333 = vmatprep.subr.bf16.mxu0 0
    %334 = vmatpush1.bf16.msra.mxu0 0
    %335 = vmatprep.subr.bf16.mxu0 0
    %336 = vmatpush1.bf16.msra.mxu0 0
    %337 = vmatprep.mubr.bf16.mxu0 0
    %338 = vmatmul.mubr.bf16.gmra.mrb[0].mxu0 %v262
    %v339 = vpop.f32.mrb[0].mxu0
    %v340 = vadd.f32 %v151, %v339
    %v341 = vpop.f32.mrb[0].mxu0
    %v342 = vadd.f32 %v155, %v341
    %v343 = vpop.f32.mrb[0].mxu0
    %v344 = vpop.f32.mrb[0].mxu0
    %345 = vdwg.mxu0
    %346 = vmatprep.subr.bf16.mxu0 %v229
    %347 = vmatpush1.bf16.msra.mxu0 %v228
    %348 = vmatprep.subr.bf16.mxu0 %v235
    %349 = vmatpush1.bf16.msra.mxu0 %v234
    %350 = vmatprep.subr.bf16.mxu0 %v241
    %351 = vmatpush1.bf16.msra.mxu0 %v240
    %352 = vmatprep.subr.bf16.mxu0 0
    %353 = vmatpush1.bf16.msra.mxu0 0
    %354 = vmatprep.subr.bf16.mxu0 0
    %355 = vmatpush1.bf16.msra.mxu0 0
    %356 = vmatprep.subr.bf16.mxu0 0
    %357 = vmatpush1.bf16.msra.mxu0 0
    %358 = vmatprep.subr.bf16.mxu0 0
    %359 = vmatpush1.bf16.msra.mxu0 0
    %360 = vmatprep.subr.bf16.mxu0 0
    %361 = vmatpush1.bf16.msra.mxu0 0
    %362 = vmatprep.subr.bf16.mxu0 0
    %363 = vmatpush1.bf16.msra.mxu0 0
    %364 = vmatprep.subr.bf16.mxu0 0
    %365 = vmatpush1.bf16.msra.mxu0 0
    %366 = vmatprep.subr.bf16.mxu0 0
    %367 = vmatpush1.bf16.msra.mxu0 0
    %368 = vmatprep.subr.bf16.mxu0 0
    %369 = vmatpush1.bf16.msra.mxu0 0
    %370 = vmatprep.subr.bf16.mxu0 0
    %371 = vmatpush1.bf16.msra.mxu0 0
    %372 = vmatprep.subr.bf16.mxu0 0
    %373 = vmatpush1.bf16.msra.mxu0 0
    %374 = vmatprep.subr.bf16.mxu0 0
    %375 = vmatpush1.bf16.msra.mxu0 0
    %376 = vmatprep.subr.bf16.mxu0 0
    %377 = vmatpush1.bf16.msra.mxu0 0
    %378 = vmatprep.mubr.bf16.mxu0 0
    %379 = vmatmul.mubr.bf16.gmra.mrb[0].mxu0 %v262
    %v380 = vpop.f32.mrb[0].mxu0
    %v381 = vadd.f32 %v159, %v380
    %v382 = vpop.f32.mrb[0].mxu0
    %v383 = vadd.f32 %v163, %v382
    %v384 = vpop.f32.mrb[0].mxu0
    %v385 = vpop.f32.mrb[0].mxu0
    %386 = vdwg.mxu0
    %v387 = vmax.f32 %v299, 0.0
    %v388 = vmax.f32 %v301, 0.0
    %v389 = vmax.f32 %v340, 0.0
    %v390 = vmax.f32 %v342, 0.0
    %v391 = vmax.f32 %v381, 0.0
    %v392 = vmax.f32 %v383, 0.0
    %v393 = vpack.c.bf16 %v387, %v387
    %v394 = vpack.c.bf16 %v388, %v388
    %v395 = vpack.c.bf16 %v389, %v389
    %v396 = vpack.c.bf16 %v390, %v390
    %v397 = vpack.c.bf16 %v391, %v391
    %v398 = vpack.c.bf16 %v392, %v392
    %v399 = vld [vmem:[#allocation4] sm:$0xff]
    %v400 = vld [vmem:[#allocation4 + $0x8] sm:$0xf]
    %v401 = vld [vmem:[#allocation4 + $0xc] sm:$0xff]
    %v402 = vld [vmem:[#allocation4 + $0x14] sm:$0xf]
    %v403 = vld [vmem:[#allocation4 + $0x18] sm:$0xff]
    %v404 = vld [vmem:[#allocation4 + $0x20] sm:$0xf]
    %v405 = vld [vmem:[#allocation4 + $0x24] sm:$0xff]
    %v406 = vld [vmem:[#allocation4 + $0x2c] sm:$0xf]
    %v407 = vld [vmem:[#allocation4 + $0x30] sm:$0xff]
    %v408 = vld [vmem:[#allocation4 + $0x38] sm:$0xf]
    %v409 = vld [vmem:[#allocation4 + $0x3c] sm:$0xff]
    %v410 = vld [vmem:[#allocation4 + $0x44] sm:$0xf]
    %v411 = vld [vmem:[#allocation4 + $0x48] sm:$0xff]
    %v412 = vld [vmem:[#allocation4 + $0x50] sm:$0xf]
    %v413 = vld [vmem:[#allocation4 + $0x54] sm:$0xff]
    %v414 = vld [vmem:[#allocation4 + $0x5c] sm:$0xf]
    %v415 = vld [vmem:[#allocation4 + $0x60] sm:$0xff]
    %v416 = vld [vmem:[#allocation4 + $0x68] sm:$0xf]
    %v417 = vld [vmem:[#allocation4 + $0x6c] sm:$0xff]
    %v418 = vld [vmem:[#allocation4 + $0x74] sm:$0xf]
    %v419 = vld [vmem:[#allocation4 + $0x78] sm:$0xff]
    %v420 = vld [vmem:[#allocation4 + $0x80] sm:$0xf]
    %v421 = vld [vmem:[#allocation4 + $0x84] sm:$0xff]
    %v422 = vld [vmem:[#allocation4 + $0x8c] sm:$0xf]
    %v423 = vld [vmem:[#allocation4 + $0x90] sm:$0xff]
    %v424 = vld [vmem:[#allocation4 + $0x98] sm:$0xf]
    %v425 = vld [vmem:[#allocation4 + $0x9c] sm:$0xff]
    %v426 = vld [vmem:[#allocation4 + $0xa4] sm:$0xf]
    %v427 = vld [vmem:[#allocation4 + $0xa8] sm:$0xff]
    %v428 = vld [vmem:[#allocation4 + $0xb0] sm:$0xf]
    %v429 = vld [vmem:[#allocation4 + $0xb4] sm:$0xff]
    %v430 = vld [vmem:[#allocation4 + $0xbc] sm:$0xf]
    %v431 = vld [vmem:[#allocation4 + $0xc0] sm:$0xff]
    %v432 = vld [vmem:[#allocation4 + $0xc8] sm:$0xf]
    %v433 = vld [vmem:[#allocation4 + $0xcc] sm:$0xff]
    %v434 = vld [vmem:[#allocation4 + $0xd4] sm:$0xf]
    %v435 = vld [vmem:[#allocation4 + $0xd8] sm:$0xff]
    %v436 = vld [vmem:[#allocation4 + $0xe0] sm:$0xf]
    %v437 = vld [vmem:[#allocation4 + $0xe4] sm:$0xff]
    %v438 = vld [vmem:[#allocation4 + $0xec] sm:$0xf]
    %v439 = vld [vmem:[#allocation4 + $0xf0] sm:$0xff]
    %v440 = vld [vmem:[#allocation4 + $0xf8] sm:$0xf]
    %v441 = vld [vmem:[#allocation4 + $0xfc] sm:$0xff]
    %v442 = vld [vmem:[#allocation4 + $0x104] sm:$0xf]
    %v443 = vld [vmem:[#allocation4 + $0x108] sm:$0xff]
    %v444 = vld [vmem:[#allocation4 + $0x110] sm:$0xf]
    %v445 = vld [vmem:[#allocation4 + $0x114] sm:$0xff]
    %v446 = vld [vmem:[#allocation4 + $0x11c] sm:$0xf]
    %v447 = vld [vmem:[#allocation4 + $0x120] sm:$0xff]
    %v448 = vld [vmem:[#allocation4 + $0x128] sm:$0xf]
    %v449 = vld [vmem:[#allocation4 + $0x12c] sm:$0xff]
    %v450 = vld [vmem:[#allocation4 + $0x134] sm:$0xf]
    %v451 = vld [vmem:[#allocation4 + $0x138] sm:$0xff]
    %v452 = vld [vmem:[#allocation4 + $0x140] sm:$0xf]
    %v453 = vld [vmem:[#allocation4 + $0x144] sm:$0xff]
    %v454 = vld [vmem:[#allocation4 + $0x14c] sm:$0xf]
    %v455 = vld [vmem:[#allocation4 + $0x150] sm:$0xff]
    %v456 = vld [vmem:[#allocation4 + $0x158] sm:$0xf]
    %v457 = vld [vmem:[#allocation4 + $0x15c] sm:$0xff]
    %v458 = vld [vmem:[#allocation4 + $0x164] sm:$0xf]
    %v459 = vld [vmem:[#allocation4 + $0x168] sm:$0xff]
    %v460 = vld [vmem:[#allocation4 + $0x170] sm:$0xf]
    %v461 = vld [vmem:[#allocation4 + $0x174] sm:$0xff]
    %v462 = vld [vmem:[#allocation4 + $0x17c] sm:$0xf]
    %v463 = vld [vmem:[#allocation4 + $0x180] sm:$0xff]
    %v464 = vld [vmem:[#allocation4 + $0x188] sm:$0xf]
    %v465 = vld [vmem:[#allocation4 + $0x18c] sm:$0xff]
    %v466 = vld [vmem:[#allocation4 + $0x194] sm:$0xf]
    %v467 = vld [vmem:[#allocation4 + $0x198] sm:$0xff]
    %v468 = vld [vmem:[#allocation4 + $0x1a0] sm:$0xf]
    %v469 = vld [vmem:[#allocation4 + $0x1a4] sm:$0xff]
    %v470 = vld [vmem:[#allocation4 + $0x1ac] sm:$0xf]
    %v471 = vld [vmem:[#allocation4 + $0x1b0] sm:$0xff]
    %v472 = vld [vmem:[#allocation4 + $0x1b8] sm:$0xf]
    %v473 = vld [vmem:[#allocation4 + $0x1bc] sm:$0xff]
    %v474 = vld [vmem:[#allocation4 + $0x1c4] sm:$0xf]
    %v475 = vld [vmem:[#allocation4 + $0x1c8] sm:$0xff]
    %v476 = vld [vmem:[#allocation4 + $0x1d0] sm:$0xf]
    %v477 = vld [vmem:[#allocation4 + $0x1d4] sm:$0xff]
    %v478 = vld [vmem:[#allocation4 + $0x1dc] sm:$0xf]
    %v479 = vld [vmem:[#allocation4 + $0x1e0] sm:$0xff]
    %v480 = vld [vmem:[#allocation4 + $0x1e8] sm:$0xf]
    %v481 = vld [vmem:[#allocation4 + $0x1ec] sm:$0xff]
    %v482 = vld [vmem:[#allocation4 + $0x1f4] sm:$0xf]
    %v483 = vld [vmem:[#allocation4 + $0x1f8] sm:$0xff]
    %v484 = vld [vmem:[#allocation4 + $0x200] sm:$0xf]
    %v485 = vld [vmem:[#allocation4 + $0x204] sm:$0xff]
    %v486 = vld [vmem:[#allocation4 + $0x20c] sm:$0xf]
    %v487 = vld [vmem:[#allocation4 + $0x210] sm:$0xff]
    %v488 = vld [vmem:[#allocation4 + $0x218] sm:$0xf]
    %v489 = vld [vmem:[#allocation4 + $0x21c] sm:$0xff]
    %v490 = vld [vmem:[#allocation4 + $0x224] sm:$0xf]
    %v491 = vld [vmem:[#allocation4 + $0x228] sm:$0xff]
    %v492 = vld [vmem:[#allocation4 + $0x230] sm:$0xf]
    %v493 = vld [vmem:[#allocation4 + $0x234] sm:$0xff]
    %v494 = vld [vmem:[#allocation4 + $0x23c] sm:$0xf]
    %v495 = vld [vmem:[#allocation4 + $0x240] sm:$0xff]
    %v496 = vld [vmem:[#allocation4 + $0x248] sm:$0xf]
    %v497 = vld [vmem:[#allocation4 + $0x24c] sm:$0xff]
    %v498 = vld [vmem:[#allocation4 + $0x254] sm:$0xf]
    %v499 = vld [vmem:[#allocation4 + $0x258] sm:$0xff]
    %v500 = vld [vmem:[#allocation4 + $0x260] sm:$0xf]
    %v501 = vld [vmem:[#allocation4 + $0x264] sm:$0xff]
    %v502 = vld [vmem:[#allocation4 + $0x26c] sm:$0xf]
    %v503 = vld [vmem:[#allocation4 + $0x270] sm:$0xff]
    %v504 = vld [vmem:[#allocation4 + $0x278] sm:$0xf]
    %v505 = vld [vmem:[#allocation4 + $0x27c] sm:$0xff]
    %v506 = vld [vmem:[#allocation4 + $0x284] sm:$0xf]
    %v507 = vld [vmem:[#allocation4 + $0x288] sm:$0xff]
    %v508 = vld [vmem:[#allocation4 + $0x290] sm:$0xf]
    %v509 = vld [vmem:[#allocation4 + $0x294] sm:$0xff]
    %v510 = vld [vmem:[#allocation4 + $0x29c] sm:$0xf]
    %v511 = vld [vmem:[#allocation4 + $0x2a0] sm:$0xff]
    %v512 = vld [vmem:[#allocation4 + $0x2a8] sm:$0xf]
    %v513 = vld [vmem:[#allocation4 + $0x2ac] sm:$0xff]
    %v514 = vld [vmem:[#allocation4 + $0x2b4] sm:$0xf]
    %v515 = vld [vmem:[#allocation4 + $0x2b8] sm:$0xff]
    %v516 = vld [vmem:[#allocation4 + $0x2c0] sm:$0xf]
    %v517 = vld [vmem:[#allocation4 + $0x2c4] sm:$0xff]
    %v518 = vld [vmem:[#allocation4 + $0x2cc] sm:$0xf]
    %v519 = vld [vmem:[#allocation4 + $0x2d0] sm:$0xff]
    %v520 = vld [vmem:[#allocation4 + $0x2d8] sm:$0xf]
    %v521 = vld [vmem:[#allocation4 + $0x2dc] sm:$0xff]
    %v522 = vld [vmem:[#allocation4 + $0x2e4] sm:$0xf]
    %v523 = vld [vmem:[#allocation4 + $0x2e8] sm:$0xff]
    %v524 = vld [vmem:[#allocation4 + $0x2f0] sm:$0xf]
    %v525 = vld [vmem:[#allocation4 + $0x2f4] sm:$0xff]
    %v526 = vld [vmem:[#allocation4 + $0x2fc] sm:$0xf]
    %v527 = vld [vmem:[#allocation4 + $0x300] sm:$0xff]
    %v528 = vld [vmem:[#allocation4 + $0x308] sm:$0xf]
    %v529 = vld [vmem:[#allocation4 + $0x30c] sm:$0xff]
    %v530 = vld [vmem:[#allocation4 + $0x314] sm:$0xf]
    %v531 = vld [vmem:[#allocation4 + $0x318] sm:$0xff]
    %v532 = vld [vmem:[#allocation4 + $0x320] sm:$0xf]
    %v533 = vld [vmem:[#allocation4 + $0x324] sm:$0xff]
    %v534 = vld [vmem:[#allocation4 + $0x32c] sm:$0xf]
    %v535 = vld [vmem:[#allocation4 + $0x330] sm:$0xff]
    %v536 = vld [vmem:[#allocation4 + $0x338] sm:$0xf]
    %v537 = vld [vmem:[#allocation4 + $0x33c] sm:$0xff]
    %v538 = vld [vmem:[#allocation4 + $0x344] sm:$0xf]
    %v539 = vld [vmem:[#allocation4 + $0x348] sm:$0xff]
    %v540 = vld [vmem:[#allocation4 + $0x350] sm:$0xf]
    %v541 = vld [vmem:[#allocation4 + $0x354] sm:$0xff]
    %v542 = vld [vmem:[#allocation4 + $0x35c] sm:$0xf]
    %v543 = vld [vmem:[#allocation4 + $0x360] sm:$0xff]
    %v544 = vld [vmem:[#allocation4 + $0x368] sm:$0xf]
    %v545 = vld [vmem:[#allocation4 + $0x36c] sm:$0xff]
    %v546 = vld [vmem:[#allocation4 + $0x374] sm:$0xf]
    %v547 = vld [vmem:[#allocation4 + $0x378] sm:$0xff]
    %v548 = vld [vmem:[#allocation4 + $0x380] sm:$0xf]
    %v549 = vld [vmem:[#allocation4 + $0x384] sm:$0xff]
    %v550 = vld [vmem:[#allocation4 + $0x38c] sm:$0xf]
    %v551 = vld [vmem:[#allocation4 + $0x390] sm:$0xff]
    %v552 = vld [vmem:[#allocation4 + $0x398] sm:$0xf]
    %v553 = vld [vmem:[#allocation4 + $0x39c] sm:$0xff]
    %v554 = vld [vmem:[#allocation4 + $0x3a4] sm:$0xf]
    %v555 = vld [vmem:[#allocation4 + $0x3a8] sm:$0xff]
    %v556 = vld [vmem:[#allocation4 + $0x3b0] sm:$0xf]
    %v557 = vld [vmem:[#allocation4 + $0x3b4] sm:$0xff]
    %v558 = vld [vmem:[#allocation4 + $0x3bc] sm:$0xf]
    %v559 = vld [vmem:[#allocation4 + $0x3c0] sm:$0xff]
    %v560 = vld [vmem:[#allocation4 + $0x3c8] sm:$0xf]
    %v561 = vld [vmem:[#allocation4 + $0x3cc] sm:$0xff]
    %v562 = vld [vmem:[#allocation4 + $0x3d4] sm:$0xf]
    %v563 = vld [vmem:[#allocation4 + $0x3d8] sm:$0xff]
    %v564 = vld [vmem:[#allocation4 + $0x3e0] sm:$0xf]
    %v565 = vld [vmem:[#allocation4 + $0x3e4] sm:$0xff]
    %v566 = vld [vmem:[#allocation4 + $0x3ec] sm:$0xf]
    %v567 = vld [vmem:[#allocation4 + $0x3f0] sm:$0xff]
    %v568 = vld [vmem:[#allocation4 + $0x3f8] sm:$0xf]
    %v569 = vld [vmem:[#allocation4 + $0x3fc] sm:$0xff]
    %v570 = vld [vmem:[#allocation4 + $0x404] sm:$0xf]
    %v571 = vld [vmem:[#allocation4 + $0x408] sm:$0xff]
    %v572 = vld [vmem:[#allocation4 + $0x410] sm:$0xf]
    %v573 = vld [vmem:[#allocation4 + $0x414] sm:$0xff]
    %v574 = vld [vmem:[#allocation4 + $0x41c] sm:$0xf]
    %v575 = vld [vmem:[#allocation4 + $0x420] sm:$0xff]
    %v576 = vld [vmem:[#allocation4 + $0x428] sm:$0xf]
    %v577 = vld [vmem:[#allocation4 + $0x42c] sm:$0xff]
    %v578 = vld [vmem:[#allocation4 + $0x434] sm:$0xf]
    %v579 = vld [vmem:[#allocation4 + $0x438] sm:$0xff]
    %v580 = vld [vmem:[#allocation4 + $0x440] sm:$0xf]
    %v581 = vld [vmem:[#allocation4 + $0x444] sm:$0xff]
    %v582 = vld [vmem:[#allocation4 + $0x44c] sm:$0xf]
    %v583 = vld [vmem:[#allocation4 + $0x450] sm:$0xff]
    %v584 = vld [vmem:[#allocation4 + $0x458] sm:$0xf]
    %v585 = vld [vmem:[#allocation4 + $0x45c] sm:$0xff]
    %v586 = vld [vmem:[#allocation4 + $0x464] sm:$0xf]
    %v587 = vld [vmem:[#allocation4 + $0x468] sm:$0xff]
    %v588 = vld [vmem:[#allocation4 + $0x470] sm:$0xf]
    %v589 = vld [vmem:[#allocation4 + $0x474] sm:$0xff]
    %v590 = vld [vmem:[#allocation4 + $0x47c] sm:$0xf]
    %v592 = vlaneseq
    %v593 = vshrl.u32 %v592, 7
    %v594 = vsub.s32 0, %v593
    %v595 = vrot.slane %v113, %v594
    %v596 = vlaneseq
    %v597 = vshrl.u32 %v596, 7
    %v598 = vsub.s32 1, %v597
    %v599 = vrot.slane %v113, %v598
    %v600 = vlaneseq
    %v601 = vshrl.u32 %v600, 7
    %v602 = vsub.s32 2, %v601
    %v603 = vrot.slane %v113, %v602
    %v799 = vunpack.c.l.b16 %v399
    %v800 = vunpack.c.h.b16 %v399
    %v801 = vunpack.c.l.b16 %v400
    %v802 = vunpack.c.l.b16 %v401
    %v803 = vunpack.c.h.b16 %v401
    %v804 = vunpack.c.l.b16 %v402
    %v805 = vunpack.c.l.b16 %v403
    %v806 = vunpack.c.h.b16 %v403
    %v807 = vunpack.c.l.b16 %v404
    %v808 = vunpack.c.l.b16 %v405
    %v809 = vunpack.c.h.b16 %v405
    %v810 = vunpack.c.l.b16 %v406
    %v811 = vunpack.c.l.b16 %v407
    %v812 = vunpack.c.h.b16 %v407
    %v813 = vunpack.c.l.b16 %v408
    %v814 = vunpack.c.l.b16 %v409
    %v815 = vunpack.c.h.b16 %v409
    %v816 = vunpack.c.l.b16 %v410
    %v817 = vunpack.c.l.b16 %v411
    %v818 = vunpack.c.h.b16 %v411
    %v819 = vunpack.c.l.b16 %v412
    %v820 = vunpack.c.l.b16 %v413
    %v821 = vunpack.c.h.b16 %v413
    %v822 = vunpack.c.l.b16 %v414
    %v823 = vunpack.c.l.b16 %v415
    %v824 = vunpack.c.h.b16 %v415
    %v825 = vunpack.c.l.b16 %v416
    %v826 = vunpack.c.l.b16 %v417
    %v827 = vunpack.c.h.b16 %v417
    %v828 = vunpack.c.l.b16 %v418
    %v829 = vunpack.c.l.b16 %v419
    %v830 = vunpack.c.h.b16 %v419
    %v831 = vunpack.c.l.b16 %v420
    %v832 = vunpack.c.l.b16 %v421
    %v833 = vunpack.c.h.b16 %v421
    %v834 = vunpack.c.l.b16 %v422
    %v835 = vunpack.c.l.b16 %v423
    %v836 = vunpack.c.h.b16 %v423
    %v837 = vunpack.c.l.b16 %v424
    %v838 = vunpack.c.l.b16 %v425
    %v839 = vunpack.c.h.b16 %v425
    %v840 = vunpack.c.l.b16 %v426
    %v841 = vunpack.c.l.b16 %v427
    %v842 = vunpack.c.h.b16 %v427
    %v843 = vunpack.c.l.b16 %v428
    %v844 = vunpack.c.l.b16 %v429
    %v845 = vunpack.c.h.b16 %v429
    %v846 = vunpack.c.l.b16 %v430
    %v847 = vunpack.c.l.b16 %v431
    %v848 = vunpack.c.h.b16 %v431
    %v849 = vunpack.c.l.b16 %v432
    %v850 = vunpack.c.l.b16 %v433
    %v851 = vunpack.c.h.b16 %v433
    %v852 = vunpack.c.l.b16 %v434
    %v853 = vunpack.c.l.b16 %v435
    %v854 = vunpack.c.h.b16 %v435
    %v855 = vunpack.c.l.b16 %v436
    %v856 = vunpack.c.l.b16 %v437
    %v857 = vunpack.c.h.b16 %v437
    %v858 = vunpack.c.l.b16 %v438
    %v859 = vunpack.c.l.b16 %v439
    %v860 = vunpack.c.h.b16 %v439
    %v861 = vunpack.c.l.b16 %v440
    %v862 = vunpack.c.l.b16 %v441
    %v863 = vunpack.c.h.b16 %v441
    %v864 = vunpack.c.l.b16 %v442
    %v865 = vunpack.c.l.b16 %v443
    %v866 = vunpack.c.h.b16 %v443
    %v867 = vunpack.c.l.b16 %v444
    %v868 = vunpack.c.l.b16 %v445
    %v869 = vunpack.c.h.b16 %v445
    %v870 = vunpack.c.l.b16 %v446
    %v871 = vunpack.c.l.b16 %v447
    %v872 = vunpack.c.h.b16 %v447
    %v873 = vunpack.c.l.b16 %v448
    %v874 = vunpack.c.l.b16 %v449
    %v875 = vunpack.c.h.b16 %v449
    %v876 = vunpack.c.l.b16 %v450
    %v877 = vunpack.c.l.b16 %v451
    %v878 = vunpack.c.h.b16 %v451
    %v879 = vunpack.c.l.b16 %v452
    %v880 = vunpack.c.l.b16 %v453
    %v881 = vunpack.c.h.b16 %v453
    %v882 = vunpack.c.l.b16 %v454
    %v883 = vunpack.c.l.b16 %v455
    %v884 = vunpack.c.h.b16 %v455
    %v885 = vunpack.c.l.b16 %v456
    %v886 = vunpack.c.l.b16 %v457
    %v887 = vunpack.c.h.b16 %v457
    %v888 = vunpack.c.l.b16 %v458
    %v889 = vunpack.c.l.b16 %v459
    %v890 = vunpack.c.h.b16 %v459
    %v891 = vunpack.c.l.b16 %v460
    %v892 = vunpack.c.l.b16 %v461
    %v893 = vunpack.c.h.b16 %v461
    %v894 = vunpack.c.l.b16 %v462
    %v895 = vunpack.c.l.b16 %v463
    %v896 = vunpack.c.h.b16 %v463
    %v897 = vunpack.c.l.b16 %v464
    %v898 = vunpack.c.l.b16 %v465
    %v899 = vunpack.c.h.b16 %v465
    %v900 = vunpack.c.l.b16 %v466
    %v901 = vunpack.c.l.b16 %v467
    %v902 = vunpack.c.h.b16 %v467
    %v903 = vunpack.c.l.b16 %v468
    %v904 = vunpack.c.l.b16 %v469
    %v905 = vunpack.c.h.b16 %v469
    %v906 = vunpack.c.l.b16 %v470
    %v907 = vunpack.c.l.b16 %v471
    %v908 = vunpack.c.h.b16 %v471
    %v909 = vunpack.c.l.b16 %v472
    %v910 = vunpack.c.l.b16 %v473
    %v911 = vunpack.c.h.b16 %v473
    %v912 = vunpack.c.l.b16 %v474
    %v913 = vunpack.c.l.b16 %v475
    %v914 = vunpack.c.h.b16 %v475
    %v915 = vunpack.c.l.b16 %v476
    %v916 = vunpack.c.l.b16 %v477
    %v917 = vunpack.c.h.b16 %v477
    %v918 = vunpack.c.l.b16 %v478
    %v919 = vunpack.c.l.b16 %v479
    %v920 = vunpack.c.h.b16 %v479
    %v921 = vunpack.c.l.b16 %v480
    %v922 = vunpack.c.l.b16 %v481
    %v923 = vunpack.c.h.b16 %v481
    %v924 = vunpack.c.l.b16 %v482
    %v925 = vunpack.c.l.b16 %v483
    %v926 = vunpack.c.h.b16 %v483
    %v927 = vunpack.c.l.b16 %v484
    %v928 = vunpack.c.l.b16 %v485
    %v929 = vunpack.c.h.b16 %v485
    %v930 = vunpack.c.l.b16 %v486
    %v931 = vunpack.c.l.b16 %v487
    %v932 = vunpack.c.h.b16 %v487
    %v933 = vunpack.c.l.b16 %v488
    %v934 = vunpack.c.l.b16 %v489
    %v935 = vunpack.c.h.b16 %v489
    %v936 = vunpack.c.l.b16 %v490
    %v937 = vunpack.c.l.b16 %v491
    %v938 = vunpack.c.h.b16 %v491
    %v939 = vunpack.c.l.b16 %v492
    %v940 = vunpack.c.l.b16 %v493
    %v941 = vunpack.c.h.b16 %v493
    %v942 = vunpack.c.l.b16 %v494
    %v943 = vunpack.c.l.b16 %v495
    %v944 = vunpack.c.h.b16 %v495
    %v945 = vunpack.c.l.b16 %v496
    %v946 = vunpack.c.l.b16 %v497
    %v947 = vunpack.c.h.b16 %v497
    %v948 = vunpack.c.l.b16 %v498
    %v949 = vunpack.c.l.b16 %v499
    %v950 = vunpack.c.h.b16 %v499
    %v951 = vunpack.c.l.b16 %v500
    %v952 = vunpack.c.l.b16 %v501
    %v953 = vunpack.c.h.b16 %v501
    %v954 = vunpack.c.l.b16 %v502
    %v955 = vunpack.c.l.b16 %v503
    %v956 = vunpack.c.h.b16 %v503
    %v957 = vunpack.c.l.b16 %v504
    %v958 = vunpack.c.l.b16 %v505
    %v959 = vunpack.c.h.b16 %v505
    %v960 = vunpack.c.l.b16 %v506
    %v961 = vunpack.c.l.b16 %v507
    %v962 = vunpack.c.h.b16 %v507
    %v963 = vunpack.c.l.b16 %v508
    %v964 = vunpack.c.l.b16 %v509
    %v965 = vunpack.c.h.b16 %v509
    %v966 = vunpack.c.l.b16 %v510
    %v967 = vunpack.c.l.b16 %v511
    %v968 = vunpack.c.h.b16 %v511
    %v969 = vunpack.c.l.b16 %v512
    %v970 = vunpack.c.l.b16 %v513
    %v971 = vunpack.c.h.b16 %v513
    %v972 = vunpack.c.l.b16 %v514
    %v973 = vunpack.c.l.b16 %v515
    %v974 = vunpack.c.h.b16 %v515
    %v975 = vunpack.c.l.b16 %v516
    %v976 = vunpack.c.l.b16 %v517
    %v977 = vunpack.c.h.b16 %v517
    %v978 = vunpack.c.l.b16 %v518
    %v979 = vunpack.c.l.b16 %v519
    %v980 = vunpack.c.h.b16 %v519
    %v981 = vunpack.c.l.b16 %v520
    %v982 = vunpack.c.l.b16 %v521
    %v983 = vunpack.c.h.b16 %v521
    %v984 = vunpack.c.l.b16 %v522
    %v985 = vunpack.c.l.b16 %v523
    %v986 = vunpack.c.h.b16 %v523
    %v987 = vunpack.c.l.b16 %v524
    %v988 = vunpack.c.l.b16 %v525
    %v989 = vunpack.c.h.b16 %v525
    %v990 = vunpack.c.l.b16 %v526
    %v991 = vunpack.c.l.b16 %v527
    %v992 = vunpack.c.h.b16 %v527
    %v993 = vunpack.c.l.b16 %v528
    %v994 = vunpack.c.l.b16 %v529
    %v995 = vunpack.c.h.b16 %v529
    %v996 = vunpack.c.l.b16 %v530
    %v997 = vunpack.c.l.b16 %v531
    %v998 = vunpack.c.h.b16 %v531
    %v999 = vunpack.c.l.b16 %v532
    %v1000 = vunpack.c.l.b16 %v533
    %v1001 = vunpack.c.h.b16 %v533
    %v1002 = vunpack.c.l.b16 %v534
    %v1003 = vunpack.c.l.b16 %v535
    %v1004 = vunpack.c.h.b16 %v535
    %v1005 = vunpack.c.l.b16 %v536
    %v1006 = vunpack.c.l.b16 %v537
    %v1007 = vunpack.c.h.b16 %v537
    %v1008 = vunpack.c.l.b16 %v538
    %v1009 = vunpack.c.l.b16 %v539
    %v1010 = vunpack.c.h.b16 %v539
    %v1011 = vunpack.c.l.b16 %v540
    %v1012 = vunpack.c.l.b16 %v541
    %v1013 = vunpack.c.h.b16 %v541
    %v1014 = vunpack.c.l.b16 %v542
    %v1015 = vunpack.c.l.b16 %v543
    %v1016 = vunpack.c.h.b16 %v543
    %v1017 = vunpack.c.l.b16 %v544
    %v1018 = vunpack.c.l.b16 %v545
    %v1019 = vunpack.c.h.b16 %v545
    %v1020 = vunpack.c.l.b16 %v546
    %v1021 = vunpack.c.l.b16 %v547
    %v1022 = vunpack.c.h.b16 %v547
    %v1023 = vunpack.c.l.b16 %v548
    %v1024 = vunpack.c.l.b16 %v549
    %v1025 = vunpack.c.h.b16 %v549
    %v1026 = vunpack.c.l.b16 %v550
    %v1027 = vunpack.c.l.b16 %v551
    %v1028 = vunpack.c.h.b16 %v551
    %v1029 = vunpack.c.l.b16 %v552
    %v1030 = vunpack.c.l.b16 %v553
    %v1031 = vunpack.c.h.b16 %v553
    %v1032 = vunpack.c.l.b16 %v554
    %v1033 = vunpack.c.l.b16 %v555
    %v1034 = vunpack.c.h.b16 %v555
    %v1035 = vunpack.c.l.b16 %v556
    %v1036 = vunpack.c.l.b16 %v557
    %v1037 = vunpack.c.h.b16 %v557
    %v1038 = vunpack.c.l.b16 %v558
    %v1039 = vunpack.c.l.b16 %v559
    %v1040 = vunpack.c.h.b16 %v559
    %v1041 = vunpack.c.l.b16 %v560
    %v1042 = vunpack.c.l.b16 %v561
    %v1043 = vunpack.c.h.b16 %v561
    %v1044 = vunpack.c.l.b16 %v562
    %v1045 = vunpack.c.l.b16 %v563
    %v1046 = vunpack.c.h.b16 %v563
    %v1047 = vunpack.c.l.b16 %v564
    %v1048 = vunpack.c.l.b16 %v565
    %v1049 = vunpack.c.h.b16 %v565
    %v1050 = vunpack.c.l.b16 %v566
    %v1051 = vunpack.c.l.b16 %v567
    %v1052 = vunpack.c.h.b16 %v567
    %v1053 = vunpack.c.l.b16 %v568
    %v1054 = vunpack.c.l.b16 %v569
    %v1055 = vunpack.c.h.b16 %v569
    %v1056 = vunpack.c.l.b16 %v570
    %v1057 = vunpack.c.l.b16 %v571
    %v1058 = vunpack.c.h.b16 %v571
    %v1059 = vunpack.c.l.b16 %v572
    %v1060 = vunpack.c.l.b16 %v573
    %v1061 = vunpack.c.h.b16 %v573
    %v1062 = vunpack.c.l.b16 %v574
    %v1063 = vunpack.c.l.b16 %v575
    %v1064 = vunpack.c.h.b16 %v575
    %v1065 = vunpack.c.l.b16 %v576
    %v1066 = vunpack.c.l.b16 %v577
    %v1067 = vunpack.c.h.b16 %v577
    %v1068 = vunpack.c.l.b16 %v578
    %v1069 = vunpack.c.l.b16 %v579
    %v1070 = vunpack.c.h.b16 %v579
    %v1071 = vunpack.c.l.b16 %v580
    %v1072 = vunpack.c.l.b16 %v581
    %v1073 = vunpack.c.h.b16 %v581
    %v1074 = vunpack.c.l.b16 %v582
    %v1075 = vunpack.c.l.b16 %v583
    %v1076 = vunpack.c.h.b16 %v583
    %v1077 = vunpack.c.l.b16 %v584
    %v1078 = vunpack.c.l.b16 %v585
    %v1079 = vunpack.c.h.b16 %v585
    %v1080 = vunpack.c.l.b16 %v586
    %v1081 = vunpack.c.l.b16 %v587
    %v1082 = vunpack.c.h.b16 %v587
    %v1083 = vunpack.c.l.b16 %v588
    %v1084 = vunpack.c.l.b16 %v589
    %v1085 = vunpack.c.h.b16 %v589
    %v1086 = vunpack.c.l.b16 %v590
    %v1087 = vpack.c.b16 %v802, %v799
    %v1088 = vpack.c.b16 %v803, %v800
    %v1089 = vpack.c.b16 %v804, %v801
    %v1090 = vpack.c.b16 %v808, %v805
    %v1091 = vpack.c.b16 %v809, %v806
    %v1092 = vpack.c.b16 %v810, %v807
    %v1093 = vpack.c.b16 %v814, %v811
    %v1094 = vpack.c.b16 %v815, %v812
    %v1095 = vpack.c.b16 %v816, %v813
    %v1096 = vpack.c.b16 %v820, %v817
    %v1097 = vpack.c.b16 %v821, %v818
    %v1098 = vpack.c.b16 %v822, %v819
    %v1099 = vpack.c.b16 %v826, %v823
    %v1100 = vpack.c.b16 %v827, %v824
    %v1101 = vpack.c.b16 %v828, %v825
    %v1102 = vpack.c.b16 %v832, %v829
    %v1103 = vpack.c.b16 %v833, %v830
    %v1104 = vpack.c.b16 %v834, %v831
    %v1105 = vpack.c.b16 %v838, %v835
    %v1106 = vpack.c.b16 %v839, %v836
    %v1107 = vpack.c.b16 %v840, %v837
    %v1108 = vpack.c.b16 %v844, %v841
    %v1109 = vpack.c.b16 %v845, %v842
    %v1110 = vpack.c.b16 %v846, %v843
    %v1111 = vpack.c.b16 %v850, %v847
    %v1112 = vpack.c.b16 %v851, %v848
    %v1113 = vpack.c.b16 %v852, %v849
    %v1114 = vpack.c.b16 %v856, %v853
    %v1115 = vpack.c.b16 %v857, %v854
    %v1116 = vpack.c.b16 %v858, %v855
    %v1117 = vpack.c.b16 %v862, %v859
    %v1118 = vpack.c.b16 %v863, %v860
    %v1119 = vpack.c.b16 %v864, %v861
    %v1120 = vpack.c.b16 %v868, %v865
    %v1121 = vpack.c.b16 %v869, %v866
    %v1122 = vpack.c.b16 %v870, %v867
    %v1123 = vpack.c.b16 %v874, %v871
    %v1124 = vpack.c.b16 %v875, %v872
    %v1125 = vpack.c.b16 %v876, %v873
    %v1126 = vpack.c.b16 %v880, %v877
    %v1127 = vpack.c.b16 %v881, %v878
    %v1128 = vpack.c.b16 %v882, %v879
    %v1129 = vpack.c.b16 %v886, %v883
    %v1130 = vpack.c.b16 %v887, %v884
    %v1131 = vpack.c.b16 %v888, %v885
    %v1132 = vpack.c.b16 %v892, %v889
    %v1133 = vpack.c.b16 %v893, %v890
    %v1134 = vpack.c.b16 %v894, %v891
    %v1135 = vpack.c.b16 %v898, %v895
    %v1136 = vpack.c.b16 %v899, %v896
    %v1137 = vpack.c.b16 %v900, %v897
    %v1138 = vpack.c.b16 %v904, %v901
    %v1139 = vpack.c.b16 %v905, %v902
    %v1140 = vpack.c.b16 %v906, %v903
    %v1141 = vpack.c.b16 %v910, %v907
    %v1142 = vpack.c.b16 %v911, %v908
    %v1143 = vpack.c.b16 %v912, %v909
    %v1144 = vpack.c.b16 %v916, %v913
    %v1145 = vpack.c.b16 %v917, %v914
    %v1146 = vpack.c.b16 %v918, %v915
    %v1147 = vpack.c.b16 %v922, %v919
    %v1148 = vpack.c.b16 %v923, %v920
    %v1149 = vpack.c.b16 %v924, %v921
    %v1150 = vpack.c.b16 %v928, %v925
    %v1151 = vpack.c.b16 %v929, %v926
    %v1152 = vpack.c.b16 %v930, %v927
    %v1153 = vpack.c.b16 %v934, %v931
    %v1154 = vpack.c.b16 %v935, %v932
    %v1155 = vpack.c.b16 %v936, %v933
    %v1156 = vpack.c.b16 %v940, %v937
    %v1157 = vpack.c.b16 %v941, %v938
    %v1158 = vpack.c.b16 %v942, %v939
    %v1159 = vpack.c.b16 %v946, %v943
    %v1160 = vpack.c.b16 %v947, %v944
    %v1161 = vpack.c.b16 %v948, %v945
    %v1162 = vpack.c.b16 %v952, %v949
    %v1163 = vpack.c.b16 %v953, %v950
    %v1164 = vpack.c.b16 %v954, %v951
    %v1165 = vpack.c.b16 %v958, %v955
    %v1166 = vpack.c.b16 %v959, %v956
    %v1167 = vpack.c.b16 %v960, %v957
    %v1168 = vpack.c.b16 %v964, %v961
    %v1169 = vpack.c.b16 %v965, %v962
    %v1170 = vpack.c.b16 %v966, %v963
    %v1171 = vpack.c.b16 %v970, %v967
    %v1172 = vpack.c.b16 %v971, %v968
    %v1173 = vpack.c.b16 %v972, %v969
    %v1174 = vpack.c.b16 %v976, %v973
    %v1175 = vpack.c.b16 %v977, %v974
    %v1176 = vpack.c.b16 %v978, %v975
    %v1177 = vpack.c.b16 %v982, %v979
    %v1178 = vpack.c.b16 %v983, %v980
    %v1179 = vpack.c.b16 %v984, %v981
    %v1180 = vpack.c.b16 %v988, %v985
    %v1181 = vpack.c.b16 %v989, %v986
    %v1182 = vpack.c.b16 %v990, %v987
    %v1183 = vpack.c.b16 %v994, %v991
    %v1184 = vpack.c.b16 %v995, %v992
    %v1185 = vpack.c.b16 %v996, %v993
    %v1186 = vpack.c.b16 %v1000, %v997
    %v1187 = vpack.c.b16 %v1001, %v998
    %v1188 = vpack.c.b16 %v1002, %v999
    %v1189 = vpack.c.b16 %v1006, %v1003
    %v1190 = vpack.c.b16 %v1007, %v1004
    %v1191 = vpack.c.b16 %v1008, %v1005
    %v1192 = vpack.c.b16 %v1012, %v1009
    %v1193 = vpack.c.b16 %v1013, %v1010
    %v1194 = vpack.c.b16 %v1014, %v1011
    %v1195 = vpack.c.b16 %v1018, %v1015
    %v1196 = vpack.c.b16 %v1019, %v1016
    %v1197 = vpack.c.b16 %v1020, %v1017
    %v1198 = vpack.c.b16 %v1024, %v1021
    %v1199 = vpack.c.b16 %v1025, %v1022
    %v1200 = vpack.c.b16 %v1026, %v1023
    %v1201 = vpack.c.b16 %v1030, %v1027
    %v1202 = vpack.c.b16 %v1031, %v1028
    %v1203 = vpack.c.b16 %v1032, %v1029
    %v1204 = vpack.c.b16 %v1036, %v1033
    %v1205 = vpack.c.b16 %v1037, %v1034
    %v1206 = vpack.c.b16 %v1038, %v1035
    %v1207 = vpack.c.b16 %v1042, %v1039
    %v1208 = vpack.c.b16 %v1043, %v1040
    %v1209 = vpack.c.b16 %v1044, %v1041
    %v1210 = vpack.c.b16 %v1048, %v1045
    %v1211 = vpack.c.b16 %v1049, %v1046
    %v1212 = vpack.c.b16 %v1050, %v1047
    %v1213 = vpack.c.b16 %v1054, %v1051
    %v1214 = vpack.c.b16 %v1055, %v1052
    %v1215 = vpack.c.b16 %v1056, %v1053
    %v1216 = vpack.c.b16 %v1060, %v1057
    %v1217 = vpack.c.b16 %v1061, %v1058
    %v1218 = vpack.c.b16 %v1062, %v1059
    %v1219 = vpack.c.b16 %v1066, %v1063
    %v1220 = vpack.c.b16 %v1067, %v1064
    %v1221 = vpack.c.b16 %v1068, %v1065
    %v1222 = vpack.c.b16 %v1072, %v1069
    %v1223 = vpack.c.b16 %v1073, %v1070
    %v1224 = vpack.c.b16 %v1074, %v1071
    %v1225 = vpack.c.b16 %v1078, %v1075
    %v1226 = vpack.c.b16 %v1079, %v1076
    %v1227 = vpack.c.b16 %v1080, %v1077
    %v1228 = vpack.c.b16 %v1084, %v1081
    %v1229 = vpack.c.b16 %v1085, %v1082
    %v1230 = vpack.c.b16 %v1086, %v1083
    %1375 = vmatprep.subr.bf16.mxu0 %v1088
    %1376 = vmatpush1.bf16.msra.mxu0 %v1087
    %1377 = vmatprep.subr.bf16.mxu0 %v1091
    %1378 = vmatpush1.bf16.msra.mxu0 %v1090
    %1379 = vmatprep.subr.bf16.mxu0 %v1094
    %1380 = vmatpush1.bf16.msra.mxu0 %v1093
    %1381 = vmatprep.subr.bf16.mxu0 %v1097
    %1382 = vmatpush1.bf16.msra.mxu0 %v1096
    %1383 = vmatprep.subr.bf16.mxu0 %v1100
    %1384 = vmatpush1.bf16.msra.mxu0 %v1099
    %1385 = vmatprep.subr.bf16.mxu0 %v1103
    %1386 = vmatpush1.bf16.msra.mxu0 %v1102
    %1387 = vmatprep.subr.bf16.mxu0 %v1106
    %1388 = vmatpush1.bf16.msra.mxu0 %v1105
    %1389 = vmatprep.subr.bf16.mxu0 %v1109
    %1390 = vmatpush1.bf16.msra.mxu0 %v1108
    %1391 = vmatprep.subr.bf16.mxu0 %v1112
    %1392 = vmatpush1.bf16.msra.mxu0 %v1111
    %1393 = vmatprep.subr.bf16.mxu0 %v1115
    %1394 = vmatpush1.bf16.msra.mxu0 %v1114
    %1395 = vmatprep.subr.bf16.mxu0 %v1118
    %1396 = vmatpush1.bf16.msra.mxu0 %v1117
    %1397 = vmatprep.subr.bf16.mxu0 %v1121
    %1398 = vmatpush1.bf16.msra.mxu0 %v1120
    %1399 = vmatprep.subr.bf16.mxu0 %v1124
    %1400 = vmatpush1.bf16.msra.mxu0 %v1123
    %1401 = vmatprep.subr.bf16.mxu0 %v1127
    %1402 = vmatpush1.bf16.msra.mxu0 %v1126
    %1403 = vmatprep.subr.bf16.mxu0 %v1130
    %1404 = vmatpush1.bf16.msra.mxu0 %v1129
    %1405 = vmatprep.subr.bf16.mxu0 %v1133
    %1406 = vmatpush1.bf16.msra.mxu0 %v1132
    %1407 = vmatprep.mubr.bf16.mxu0 %v394
    %1408 = vmatmul.mubr.bf16.gmra.mrb[0].mxu0 %v393
    %v1409 = vpop.f32.mrb[0].mxu0
    %v1410 = vadd.f32 %v595, %v1409
    %v1411 = vpop.f32.mrb[0].mxu0
    %v1412 = vadd.f32 %v599, %v1411
    %v1413 = vpop.f32.mrb[0].mxu0
    %v1414 = vpop.f32.mrb[0].mxu0
    %1415 = vdwg.mxu0
    %1416 = vmatprep.subr.bf16.mxu0 %v1136
    %1417 = vmatpush1.bf16.msra.mxu0 %v1135
    %1418 = vmatprep.subr.bf16.mxu0 %v1139
    %1419 = vmatpush1.bf16.msra.mxu0 %v1138
    %1420 = vmatprep.subr.bf16.mxu0 %v1142
    %1421 = vmatpush1.bf16.msra.mxu0 %v1141
    %1422 = vmatprep.subr.bf16.mxu0 %v1145
    %1423 = vmatpush1.bf16.msra.mxu0 %v1144
    %1424 = vmatprep.subr.bf16.mxu0 %v1148
    %1425 = vmatpush1.bf16.msra.mxu0 %v1147
    %1426 = vmatprep.subr.bf16.mxu0 %v1151
    %1427 = vmatpush1.bf16.msra.mxu0 %v1150
    %1428 = vmatprep.subr.bf16.mxu0 %v1154
    %1429 = vmatpush1.bf16.msra.mxu0 %v1153
    %1430 = vmatprep.subr.bf16.mxu0 %v1157
    %1431 = vmatpush1.bf16.msra.mxu0 %v1156
    %1432 = vmatprep.subr.bf16.mxu0 %v1160
    %1433 = vmatpush1.bf16.msra.mxu0 %v1159
    %1434 = vmatprep.subr.bf16.mxu0 %v1163
    %1435 = vmatpush1.bf16.msra.mxu0 %v1162
    %1436 = vmatprep.subr.bf16.mxu0 %v1166
    %1437 = vmatpush1.bf16.msra.mxu0 %v1165
    %1438 = vmatprep.subr.bf16.mxu0 %v1169
    %1439 = vmatpush1.bf16.msra.mxu0 %v1168
    %1440 = vmatprep.subr.bf16.mxu0 %v1172
    %1441 = vmatpush1.bf16.msra.mxu0 %v1171
    %1442 = vmatprep.subr.bf16.mxu0 %v1175
    %1443 = vmatpush1.bf16.msra.mxu0 %v1174
    %1444 = vmatprep.subr.bf16.mxu0 %v1178
    %1445 = vmatpush1.bf16.msra.mxu0 %v1177
    %1446 = vmatprep.subr.bf16.mxu0 %v1181
    %1447 = vmatpush1.bf16.msra.mxu0 %v1180
    %1448 = vmatprep.mubr.bf16.mxu0 %v396
    %1449 = vmatmul.mubr.bf16.gmra.mrb[0].mxu0 %v395
    %v1450 = vpop.f32.mrb[0].mxu0
    %v1451 = vadd.f32 %v1410, %v1450
    %v1452 = vpop.f32.mrb[0].mxu0
    %v1453 = vadd.f32 %v1412, %v1452
    %v1454 = vpop.f32.mrb[0].mxu0
    %v1455 = vpop.f32.mrb[0].mxu0
    %1456 = vdwg.mxu0
    %1457 = vmatprep.subr.bf16.mxu0 %v1184
    %1458 = vmatpush1.bf16.msra.mxu0 %v1183
    %1459 = vmatprep.subr.bf16.mxu0 %v1187
    %1460 = vmatpush1.bf16.msra.mxu0 %v1186
    %1461 = vmatprep.subr.bf16.mxu0 %v1190
    %1462 = vmatpush1.bf16.msra.mxu0 %v1189
    %1463 = vmatprep.subr.bf16.mxu0 %v1193
    %1464 = vmatpush1.bf16.msra.mxu0 %v1192
    %1465 = vmatprep.subr.bf16.mxu0 %v1196
    %1466 = vmatpush1.bf16.msra.mxu0 %v1195
    %1467 = vmatprep.subr.bf16.mxu0 %v1199
    %1468 = vmatpush1.bf16.msra.mxu0 %v1198
    %1469 = vmatprep.subr.bf16.mxu0 %v1202
    %1470 = vmatpush1.bf16.msra.mxu0 %v1201
    %1471 = vmatprep.subr.bf16.mxu0 %v1205
    %1472 = vmatpush1.bf16.msra.mxu0 %v1204
    %1473 = vmatprep.subr.bf16.mxu0 %v1208
    %1474 = vmatpush1.bf16.msra.mxu0 %v1207
    %1475 = vmatprep.subr.bf16.mxu0 %v1211
    %1476 = vmatpush1.bf16.msra.mxu0 %v1210
    %1477 = vmatprep.subr.bf16.mxu0 %v1214
    %1478 = vmatpush1.bf16.msra.mxu0 %v1213
    %1479 = vmatprep.subr.bf16.mxu0 %v1217
    %1480 = vmatpush1.bf16.msra.mxu0 %v1216
    %1481 = vmatprep.subr.bf16.mxu0 %v1220
    %1482 = vmatpush1.bf16.msra.mxu0 %v1219
    %1483 = vmatprep.subr.bf16.mxu0 %v1223
    %1484 = vmatpush1.bf16.msra.mxu0 %v1222
    %1485 = vmatprep.subr.bf16.mxu0 %v1226
    %1486 = vmatpush1.bf16.msra.mxu0 %v1225
    %1487 = vmatprep.subr.bf16.mxu0 %v1229
    %1488 = vmatpush1.bf16.msra.mxu0 %v1228
    %1489 = vmatprep.mubr.bf16.mxu0 %v398
    %1490 = vmatmul.mubr.bf16.gmra.mrb[0].mxu0 %v397
    %v1491 = vpop.f32.mrb[0].mxu0
    %v1492 = vadd.f32 %v1451, %v1491
    %v1493 = vpop.f32.mrb[0].mxu0
    %v1494 = vadd.f32 %v1453, %v1493
    %v1495 = vpop.f32.mrb[0].mxu0
    %v1496 = vpop.f32.mrb[0].mxu0
    %1497 = vdwg.mxu0
    %1498 = vmatprep.subr.bf16.mxu0 0
    %1499 = vmatpush1.bf16.msra.mxu0 %v1089
    %1500 = vmatprep.subr.bf16.mxu0 0
    %1501 = vmatpush1.bf16.msra.mxu0 %v1092
    %1502 = vmatprep.subr.bf16.mxu0 0
    %1503 = vmatpush1.bf16.msra.mxu0 %v1095
    %1504 = vmatprep.subr.bf16.mxu0 0
    %1505 = vmatpush1.bf16.msra.mxu0 %v1098
    %1506 = vmatprep.subr.bf16.mxu0 0
    %1507 = vmatpush1.bf16.msra.mxu0 %v1101
    %1508 = vmatprep.subr.bf16.mxu0 0
    %1509 = vmatpush1.bf16.msra.mxu0 %v1104
    %1510 = vmatprep.subr.bf16.mxu0 0
    %1511 = vmatpush1.bf16.msra.mxu0 %v1107
    %1512 = vmatprep.subr.bf16.mxu0 0
    %1513 = vmatpush1.bf16.msra.mxu0 %v1110
    %1514 = vmatprep.subr.bf16.mxu0 0
    %1515 = vmatpush1.bf16.msra.mxu0 %v1113
    %1516 = vmatprep.subr.bf16.mxu0 0
    %1517 = vmatpush1.bf16.msra.mxu0 %v1116
    %1518 = vmatprep.subr.bf16.mxu0 0
    %1519 = vmatpush1.bf16.msra.mxu0 %v1119
    %1520 = vmatprep.subr.bf16.mxu0 0
    %1521 = vmatpush1.bf16.msra.mxu0 %v1122
    %1522 = vmatprep.subr.bf16.mxu0 0
    %1523 = vmatpush1.bf16.msra.mxu0 %v1125
    %1524 = vmatprep.subr.bf16.mxu0 0
    %1525 = vmatpush1.bf16.msra.mxu0 %v1128
    %1526 = vmatprep.subr.bf16.mxu0 0
    %1527 = vmatpush1.bf16.msra.mxu0 %v1131
    %1528 = vmatprep.subr.bf16.mxu0 0
    %1529 = vmatpush1.bf16.msra.mxu0 %v1134
    %1530 = vmatprep.mubr.bf16.mxu0 %v394
    %1531 = vmatmul.mubr.bf16.gmra.mrb[0].mxu0 %v393
    %v1532 = vpop.f32.mrb[0].mxu0
    %v1533 = vadd.f32 %v603, %v1532
    %v1534 = vpop.f32.mrb[0].mxu0
    %v1535 = vpop.f32.mrb[0].mxu0
    %v1536 = vpop.f32.mrb[0].mxu0
    %1537 = vdwg.mxu0
    %1538 = vmatprep.subr.bf16.mxu0 0
    %1539 = vmatpush1.bf16.msra.mxu0 %v1137
    %1540 = vmatprep.subr.bf16.mxu0 0
    %1541 = vmatpush1.bf16.msra.mxu0 %v1140
    %1542 = vmatprep.subr.bf16.mxu0 0
    %1543 = vmatpush1.bf16.msra.mxu0 %v1143
    %1544 = vmatprep.subr.bf16.mxu0 0
    %1545 = vmatpush1.bf16.msra.mxu0 %v1146
    %1546 = vmatprep.subr.bf16.mxu0 0
    %1547 = vmatpush1.bf16.msra.mxu0 %v1149
    %1548 = vmatprep.subr.bf16.mxu0 0
    %1549 = vmatpush1.bf16.msra.mxu0 %v1152
    %1550 = vmatprep.subr.bf16.mxu0 0
    %1551 = vmatpush1.bf16.msra.mxu0 %v1155
    %1552 = vmatprep.subr.bf16.mxu0 0
    %1553 = vmatpush1.bf16.msra.mxu0 %v1158
    %1554 = vmatprep.subr.bf16.mxu0 0
    %1555 = vmatpush1.bf16.msra.mxu0 %v1161
    %1556 = vmatprep.subr.bf16.mxu0 0
    %1557 = vmatpush1.bf16.msra.mxu0 %v1164
    %1558 = vmatprep.subr.bf16.mxu0 0
    %1559 = vmatpush1.bf16.msra.mxu0 %v1167
    %1560 = vmatprep.subr.bf16.mxu0 0
    %1561 = vmatpush1.bf16.msra.mxu0 %v1170
    %1562 = vmatprep.subr.bf16.mxu0 0
    %1563 = vmatpush1.bf16.msra.mxu0 %v1173
    %1564 = vmatprep.subr.bf16.mxu0 0
    %1565 = vmatpush1.bf16.msra.mxu0 %v1176
    %1566 = vmatprep.subr.bf16.mxu0 0
    %1567 = vmatpush1.bf16.msra.mxu0 %v1179
    %1568 = vmatprep.subr.bf16.mxu0 0
    %1569 = vmatpush1.bf16.msra.mxu0 %v1182
    %1570 = vmatprep.mubr.bf16.mxu0 %v396
    %1571 = vmatmul.mubr.bf16.gmra.mrb[0].mxu0 %v395
    %v1572 = vpop.f32.mrb[0].mxu0
    %v1573 = vadd.f32 %v1533, %v1572
    %v1574 = vpop.f32.mrb[0].mxu0
    %v1575 = vpop.f32.mrb[0].mxu0
    %v1576 = vpop.f32.mrb[0].mxu0
    %1577 = vdwg.mxu0
    %1578 = vmatprep.subr.bf16.mxu0 0
    %1579 = vmatpush1.bf16.msra.mxu0 %v1185
    %1580 = vmatprep.subr.bf16.mxu0 0
    %1581 = vmatpush1.bf16.msra.mxu0 %v1188
    %1582 = vmatprep.subr.bf16.mxu0 0
    %1583 = vmatpush1.bf16.msra.mxu0 %v1191
    %1584 = vmatprep.subr.bf16.mxu0 0
    %1585 = vmatpush1.bf16.msra.mxu0 %v1194
    %1586 = vmatprep.subr.bf16.mxu0 0
    %1587 = vmatpush1.bf16.msra.mxu0 %v1197
    %1588 = vmatprep.subr.bf16.mxu0 0
    %1589 = vmatpush1.bf16.msra.mxu0 %v1200
    %1590 = vmatprep.subr.bf16.mxu0 0
    %1591 = vmatpush1.bf16.msra.mxu0 %v1203
    %1592 = vmatprep.subr.bf16.mxu0 0
    %1593 = vmatpush1.bf16.msra.mxu0 %v1206
    %1594 = vmatprep.subr.bf16.mxu0 0
    %1595 = vmatpush1.bf16.msra.mxu0 %v1209
    %1596 = vmatprep.subr.bf16.mxu0 0
    %1597 = vmatpush1.bf16.msra.mxu0 %v1212
    %1598 = vmatprep.subr.bf16.mxu0 0
    %1599 = vmatpush1.bf16.msra.mxu0 %v1215
    %1600 = vmatprep.subr.bf16.mxu0 0
    %1601 = vmatpush1.bf16.msra.mxu0 %v1218
    %1602 = vmatprep.subr.bf16.mxu0 0
    %1603 = vmatpush1.bf16.msra.mxu0 %v1221
    %1604 = vmatprep.subr.bf16.mxu0 0
    %1605 = vmatpush1.bf16.msra.mxu0 %v1224
    %1606 = vmatprep.subr.bf16.mxu0 0
    %1607 = vmatpush1.bf16.msra.mxu0 %v1227
    %1608 = vmatprep.subr.bf16.mxu0 0
    %1609 = vmatpush1.bf16.msra.mxu0 %v1230
    %1610 = vmatprep.mubr.bf16.mxu0 %v398
    %1611 = vmatmul.mubr.bf16.gmra.mrb[0].mxu0 %v397
    %v1612 = vpop.f32.mrb[0].mxu0
    %v1613 = vadd.f32 %v1573, %v1612
    %v1614 = vpop.f32.mrb[0].mxu0
    %v1615 = vpop.f32.mrb[0].mxu0
    %v1616 = vpop.f32.mrb[0].mxu0
    %1617 = vdwg.mxu0
    %v1618 = vmax.f32 %v1492, 0.0
    %v1619 = vmax.f32 %v1494, 0.0
    %v1620 = vmax.f32 %v1613, 0.0
    %v1621 = vpack.c.bf16 %v1618, %v1618
    %v1622 = vpack.c.bf16 %v1619, %v1619
    %v1623 = vpack.c.bf16 %v1620, %v1620
    %v1624 = vld [vmem:[#allocation6] sm:$0xff]
    %v1625 = vld [vmem:[#allocation6 + $0x8] sm:$0xff]
    %v1626 = vld [vmem:[#allocation6 + $0x10] sm:$0xff]
    %v1627 = vld [vmem:[#allocation6 + $0x18] sm:$0xff]
    %v1628 = vld [vmem:[#allocation6 + $0x20] sm:$0xff]
    %v1629 = vld [vmem:[#allocation6 + $0x28] sm:$0xff]
    %v1630 = vld [vmem:[#allocation6 + $0x30] sm:$0xff]
    %v1631 = vld [vmem:[#allocation6 + $0x38] sm:$0xff]
    %v1632 = vld [vmem:[#allocation6 + $0x40] sm:$0xff]
    %v1633 = vld [vmem:[#allocation6 + $0x48] sm:$0xff]
    %v1634 = vld [vmem:[#allocation6 + $0x50] sm:$0xff]
    %v1635 = vld [vmem:[#allocation6 + $0x58] sm:$0xff]
    %v1636 = vld [vmem:[#allocation6 + $0x60] sm:$0xff]
    %v1637 = vld [vmem:[#allocation6 + $0x68] sm:$0xff]
    %v1638 = vld [vmem:[#allocation6 + $0x70] sm:$0xff]
    %v1639 = vld [vmem:[#allocation6 + $0x78] sm:$0xff]
    %v1640 = vld [vmem:[#allocation6 + $0x80] sm:$0xff]
    %v1641 = vld [vmem:[#allocation6 + $0x88] sm:$0xff]
    %v1642 = vld [vmem:[#allocation6 + $0x90] sm:$0xff]
    %v1643 = vld [vmem:[#allocation6 + $0x98] sm:$0xff]
    %v1644 = vld [vmem:[#allocation6 + $0xa0] sm:$0xff]
    %v1645 = vld [vmem:[#allocation6 + $0xa8] sm:$0xff]
    %v1646 = vld [vmem:[#allocation6 + $0xb0] sm:$0xff]
    %v1647 = vld [vmem:[#allocation6 + $0xb8] sm:$0xff]
    %v1648 = vld [vmem:[#allocation6 + $0xc0] sm:$0xff]
    %v1649 = vld [vmem:[#allocation6 + $0xc8] sm:$0xff]
    %v1650 = vld [vmem:[#allocation6 + $0xd0] sm:$0xff]
    %v1651 = vld [vmem:[#allocation6 + $0xd8] sm:$0xff]
    %v1652 = vld [vmem:[#allocation6 + $0xe0] sm:$0xff]
    %v1653 = vld [vmem:[#allocation6 + $0xe8] sm:$0xff]
    %v1654 = vld [vmem:[#allocation6 + $0xf0] sm:$0xff]
    %v1655 = vld [vmem:[#allocation6 + $0xf8] sm:$0xff]
    %v1656 = vld [vmem:[#allocation6 + $0x100] sm:$0xff]
    %v1657 = vld [vmem:[#allocation6 + $0x108] sm:$0xff]
    %v1658 = vld [vmem:[#allocation6 + $0x110] sm:$0xff]
    %v1659 = vld [vmem:[#allocation6 + $0x118] sm:$0xff]
    %v1660 = vld [vmem:[#allocation6 + $0x120] sm:$0xff]
    %v1661 = vld [vmem:[#allocation6 + $0x128] sm:$0xff]
    %v1662 = vld [vmem:[#allocation6 + $0x130] sm:$0xff]
    %v1663 = vld [vmem:[#allocation6 + $0x138] sm:$0xff]
    %v1664 = vld [vmem:[#allocation6 + $0x140] sm:$0xff]
    %v1665 = vld [vmem:[#allocation6 + $0x148] sm:$0xff]
    %v1666 = vld [vmem:[#allocation6 + $0x150] sm:$0xff]
    %v1667 = vld [vmem:[#allocation6 + $0x158] sm:$0xff]
    %v1668 = vld [vmem:[#allocation6 + $0x160] sm:$0xff]
    %v1669 = vld [vmem:[#allocation6 + $0x168] sm:$0xff]
    %v1670 = vld [vmem:[#allocation6 + $0x170] sm:$0xff]
    %v1671 = vld [vmem:[#allocation6 + $0x178] sm:$0xff]
    %v1673 = vlaneseq
    %v1674 = vshrl.u32 %v1673, 7
    %v1675 = vsub.s32 0, %v1674
    %v1676 = vrot.slane %v114, %v1675
    %v1677 = vlaneseq
    %v1678 = vshrl.u32 %v1677, 7
    %v1679 = vsub.s32 1, %v1678
    %v1680 = vrot.slane %v114, %v1679
    %v1731 = vunpack.c.l.b16 %v1624
    %v1732 = vunpack.c.h.b16 %v1624
    %v1733 = vunpack.c.l.b16 %v1625
    %v1734 = vunpack.c.h.b16 %v1625
    %v1735 = vunpack.c.l.b16 %v1626
    %v1736 = vunpack.c.h.b16 %v1626
    %v1737 = vunpack.c.l.b16 %v1627
    %v1738 = vunpack.c.h.b16 %v1627
    %v1739 = vunpack.c.l.b16 %v1628
    %v1740 = vunpack.c.h.b16 %v1628
    %v1741 = vunpack.c.l.b16 %v1629
    %v1742 = vunpack.c.h.b16 %v1629
    %v1743 = vunpack.c.l.b16 %v1630
    %v1744 = vunpack.c.h.b16 %v1630
    %v1745 = vunpack.c.l.b16 %v1631
    %v1746 = vunpack.c.h.b16 %v1631
    %v1747 = vunpack.c.l.b16 %v1632
    %v1748 = vunpack.c.h.b16 %v1632
    %v1749 = vunpack.c.l.b16 %v1633
    %v1750 = vunpack.c.h.b16 %v1633
    %v1751 = vunpack.c.l.b16 %v1634
    %v1752 = vunpack.c.h.b16 %v1634
    %v1753 = vunpack.c.l.b16 %v1635
    %v1754 = vunpack.c.h.b16 %v1635
    %v1755 = vunpack.c.l.b16 %v1636
    %v1756 = vunpack.c.h.b16 %v1636
    %v1757 = vunpack.c.l.b16 %v1637
    %v1758 = vunpack.c.h.b16 %v1637
    %v1759 = vunpack.c.l.b16 %v1638
    %v1760 = vunpack.c.h.b16 %v1638
    %v1761 = vunpack.c.l.b16 %v1639
    %v1762 = vunpack.c.h.b16 %v1639
    %v1763 = vunpack.c.l.b16 %v1640
    %v1764 = vunpack.c.h.b16 %v1640
    %v1765 = vunpack.c.l.b16 %v1641
    %v1766 = vunpack.c.h.b16 %v1641
    %v1767 = vunpack.c.l.b16 %v1642
    %v1768 = vunpack.c.h.b16 %v1642
    %v1769 = vunpack.c.l.b16 %v1643
    %v1770 = vunpack.c.h.b16 %v1643
    %v1771 = vunpack.c.l.b16 %v1644
    %v1772 = vunpack.c.h.b16 %v1644
    %v1773 = vunpack.c.l.b16 %v1645
    %v1774 = vunpack.c.h.b16 %v1645
    %v1775 = vunpack.c.l.b16 %v1646
    %v1776 = vunpack.c.h.b16 %v1646
    %v1777 = vunpack.c.l.b16 %v1647
    %v1778 = vunpack.c.h.b16 %v1647
    %v1779 = vunpack.c.l.b16 %v1648
    %v1780 = vunpack.c.h.b16 %v1648
    %v1781 = vunpack.c.l.b16 %v1649
    %v1782 = vunpack.c.h.b16 %v1649
    %v1783 = vunpack.c.l.b16 %v1650
    %v1784 = vunpack.c.h.b16 %v1650
    %v1785 = vunpack.c.l.b16 %v1651
    %v1786 = vunpack.c.h.b16 %v1651
    %v1787 = vunpack.c.l.b16 %v1652
    %v1788 = vunpack.c.h.b16 %v1652
    %v1789 = vunpack.c.l.b16 %v1653
    %v1790 = vunpack.c.h.b16 %v1653
    %v1791 = vunpack.c.l.b16 %v1654
    %v1792 = vunpack.c.h.b16 %v1654
    %v1793 = vunpack.c.l.b16 %v1655
    %v1794 = vunpack.c.h.b16 %v1655
    %v1795 = vunpack.c.l.b16 %v1656
    %v1796 = vunpack.c.h.b16 %v1656
    %v1797 = vunpack.c.l.b16 %v1657
    %v1798 = vunpack.c.h.b16 %v1657
    %v1799 = vunpack.c.l.b16 %v1658
    %v1800 = vunpack.c.h.b16 %v1658
    %v1801 = vunpack.c.l.b16 %v1659
    %v1802 = vunpack.c.h.b16 %v1659
    %v1803 = vunpack.c.l.b16 %v1660
    %v1804 = vunpack.c.h.b16 %v1660
    %v1805 = vunpack.c.l.b16 %v1661
    %v1806 = vunpack.c.h.b16 %v1661
    %v1807 = vunpack.c.l.b16 %v1662
    %v1808 = vunpack.c.h.b16 %v1662
    %v1809 = vunpack.c.l.b16 %v1663
    %v1810 = vunpack.c.h.b16 %v1663
    %v1811 = vunpack.c.l.b16 %v1664
    %v1812 = vunpack.c.h.b16 %v1664
    %v1813 = vunpack.c.l.b16 %v1665
    %v1814 = vunpack.c.h.b16 %v1665
    %v1815 = vunpack.c.l.b16 %v1666
    %v1816 = vunpack.c.h.b16 %v1666
    %v1817 = vunpack.c.l.b16 %v1667
    %v1818 = vunpack.c.h.b16 %v1667
    %v1819 = vunpack.c.l.b16 %v1668
    %v1820 = vunpack.c.h.b16 %v1668
    %v1821 = vunpack.c.l.b16 %v1669
    %v1822 = vunpack.c.h.b16 %v1669
    %v1823 = vunpack.c.l.b16 %v1670
    %v1824 = vunpack.c.h.b16 %v1670
    %v1825 = vunpack.c.l.b16 %v1671
    %v1826 = vunpack.c.h.b16 %v1671
    %v1827 = vpack.c.b16 %v1733, %v1731
    %v1828 = vpack.c.b16 %v1734, %v1732
    %v1829 = vpack.c.b16 %v1737, %v1735
    %v1830 = vpack.c.b16 %v1738, %v1736
    %v1831 = vpack.c.b16 %v1741, %v1739
    %v1832 = vpack.c.b16 %v1742, %v1740
    %v1833 = vpack.c.b16 %v1745, %v1743
    %v1834 = vpack.c.b16 %v1746, %v1744
    %v1835 = vpack.c.b16 %v1749, %v1747
    %v1836 = vpack.c.b16 %v1750, %v1748
    %v1837 = vpack.c.b16 %v1753, %v1751
    %v1838 = vpack.c.b16 %v1754, %v1752
    %v1839 = vpack.c.b16 %v1757, %v1755
    %v1840 = vpack.c.b16 %v1758, %v1756
    %v1841 = vpack.c.b16 %v1761, %v1759
    %v1842 = vpack.c.b16 %v1762, %v1760
    %v1843 = vpack.c.b16 %v1765, %v1763
    %v1844 = vpack.c.b16 %v1766, %v1764
    %v1845 = vpack.c.b16 %v1769, %v1767
    %v1846 = vpack.c.b16 %v1770, %v1768
    %v1847 = vpack.c.b16 %v1773, %v1771
    %v1848 = vpack.c.b16 %v1774, %v1772
    %v1849 = vpack.c.b16 %v1777, %v1775
    %v1850 = vpack.c.b16 %v1778, %v1776
    %v1851 = vpack.c.b16 %v1781, %v1779
    %v1852 = vpack.c.b16 %v1782, %v1780
    %v1853 = vpack.c.b16 %v1785, %v1783
    %v1854 = vpack.c.b16 %v1786, %v1784
    %v1855 = vpack.c.b16 %v1789, %v1787
    %v1856 = vpack.c.b16 %v1790, %v1788
    %v1857 = vpack.c.b16 %v1793, %v1791
    %v1858 = vpack.c.b16 %v1794, %v1792
    %v1859 = vpack.c.b16 %v1797, %v1795
    %v1860 = vpack.c.b16 %v1798, %v1796
    %v1861 = vpack.c.b16 %v1801, %v1799
    %v1862 = vpack.c.b16 %v1802, %v1800
    %v1863 = vpack.c.b16 %v1805, %v1803
    %v1864 = vpack.c.b16 %v1806, %v1804
    %v1865 = vpack.c.b16 %v1809, %v1807
    %v1866 = vpack.c.b16 %v1810, %v1808
    %v1867 = vpack.c.b16 %v1813, %v1811
    %v1868 = vpack.c.b16 %v1814, %v1812
    %v1869 = vpack.c.b16 %v1817, %v1815
    %v1870 = vpack.c.b16 %v1818, %v1816
    %v1871 = vpack.c.b16 %v1821, %v1819
    %v1872 = vpack.c.b16 %v1822, %v1820
    %v1873 = vpack.c.b16 %v1825, %v1823
    %v1874 = vpack.c.b16 %v1826, %v1824
    %1923 = vmatprep.subr.bf16.mxu0 %v1828
    %1924 = vmatpush1.bf16.msra.mxu0 %v1827
    %1925 = vmatprep.subr.bf16.mxu0 %v1830
    %1926 = vmatpush1.bf16.msra.mxu0 %v1829
    %1927 = vmatprep.subr.bf16.mxu0 %v1832
    %1928 = vmatpush1.bf16.msra.mxu0 %v1831
    %1929 = vmatprep.subr.bf16.mxu0 %v1834
    %1930 = vmatpush1.bf16.msra.mxu0 %v1833
    %1931 = vmatprep.subr.bf16.mxu0 %v1836
    %1932 = vmatpush1.bf16.msra.mxu0 %v1835
    %1933 = vmatprep.subr.bf16.mxu0 %v1838
    %1934 = vmatpush1.bf16.msra.mxu0 %v1837
    %1935 = vmatprep.subr.bf16.mxu0 %v1840
    %1936 = vmatpush1.bf16.msra.mxu0 %v1839
    %1937 = vmatprep.subr.bf16.mxu0 %v1842
    %1938 = vmatpush1.bf16.msra.mxu0 %v1841
    %1939 = vmatprep.subr.bf16.mxu0 %v1844
    %1940 = vmatpush1.bf16.msra.mxu0 %v1843
    %1941 = vmatprep.subr.bf16.mxu0 %v1846
    %1942 = vmatpush1.bf16.msra.mxu0 %v1845
    %1943 = vmatprep.subr.bf16.mxu0 %v1848
    %1944 = vmatpush1.bf16.msra.mxu0 %v1847
    %1945 = vmatprep.subr.bf16.mxu0 %v1850
    %1946 = vmatpush1.bf16.msra.mxu0 %v1849
    %1947 = vmatprep.subr.bf16.mxu0 %v1852
    %1948 = vmatpush1.bf16.msra.mxu0 %v1851
    %1949 = vmatprep.subr.bf16.mxu0 %v1854
    %1950 = vmatpush1.bf16.msra.mxu0 %v1853
    %1951 = vmatprep.subr.bf16.mxu0 %v1856
    %1952 = vmatpush1.bf16.msra.mxu0 %v1855
    %1953 = vmatprep.subr.bf16.mxu0 %v1858
    %1954 = vmatpush1.bf16.msra.mxu0 %v1857
    %1955 = vmatprep.mubr.bf16.mxu0 %v1622
    %1956 = vmatmul.mubr.bf16.gmra.mrb[0].mxu0 %v1621
    %v1957 = vpop.f32.mrb[0].mxu0
    %v1958 = vadd.f32 %v1676, %v1957
    %v1959 = vpop.f32.mrb[0].mxu0
    %v1960 = vadd.f32 %v1680, %v1959
    %v1961 = vpop.f32.mrb[0].mxu0
    %v1962 = vpop.f32.mrb[0].mxu0
    %1963 = vdwg.mxu0
    %1964 = vmatprep.subr.bf16.mxu0 %v1860
    %1965 = vmatpush1.bf16.msra.mxu0 %v1859
    %1966 = vmatprep.subr.bf16.mxu0 %v1862
    %1967 = vmatpush1.bf16.msra.mxu0 %v1861
    %1968 = vmatprep.subr.bf16.mxu0 %v1864
    %1969 = vmatpush1.bf16.msra.mxu0 %v1863
    %1970 = vmatprep.subr.bf16.mxu0 %v1866
    %1971 = vmatpush1.bf16.msra.mxu0 %v1865
    %1972 = vmatprep.subr.bf16.mxu0 %v1868
    %1973 = vmatpush1.bf16.msra.mxu0 %v1867
    %1974 = vmatprep.subr.bf16.mxu0 %v1870
    %1975 = vmatpush1.bf16.msra.mxu0 %v1869
    %1976 = vmatprep.subr.bf16.mxu0 %v1872
    %1977 = vmatpush1.bf16.msra.mxu0 %v1871
    %1978 = vmatprep.subr.bf16.mxu0 %v1874
    %1979 = vmatpush1.bf16.msra.mxu0 %v1873
    %1980 = vmatprep.subr.bf16.mxu0 0
    %1981 = vmatpush1.bf16.msra.mxu0 0
    %1982 = vmatprep.subr.bf16.mxu0 0
    %1983 = vmatpush1.bf16.msra.mxu0 0
    %1984 = vmatprep.subr.bf16.mxu0 0
    %1985 = vmatpush1.bf16.msra.mxu0 0
    %1986 = vmatprep.subr.bf16.mxu0 0
    %1987 = vmatpush1.bf16.msra.mxu0 0
    %1988 = vmatprep.subr.bf16.mxu0 0
    %1989 = vmatpush1.bf16.msra.mxu0 0
    %1990 = vmatprep.subr.bf16.mxu0 0
    %1991 = vmatpush1.bf16.msra.mxu0 0
    %1992 = vmatprep.subr.bf16.mxu0 0
    %1993 = vmatpush1.bf16.msra.mxu0 0
    %1994 = vmatprep.subr.bf16.mxu0 0
    %1995 = vmatpush1.bf16.msra.mxu0 0
    %1996 = vmatprep.mubr.bf16.mxu0 0
    %1997 = vmatmul.mubr.bf16.gmra.mrb[0].mxu0 %v1623
    %v1998 = vpop.f32.mrb[0].mxu0
    %v1999 = vadd.f32 %v1958, %v1998
    %v2000 = vpop.f32.mrb[0].mxu0
    %v2001 = vadd.f32 %v1960, %v2000
    %v2002 = vpop.f32.mrb[0].mxu0
    %v2003 = vpop.f32.mrb[0].mxu0
    %2004 = vdwg.mxu0
    %v2005 = vmax.f32 %v1999, 0.0
    %v2006 = vmax.f32 %v2001, 0.0
    %v2007 = vpack.c.bf16 %v2005, %v2005
    %v2008 = vpack.c.bf16 %v2006, %v2006
    %v2009 = vld [vmem:[#allocation7] sm:$0xf]
    %v2010 = vld [vmem:[#allocation7 + $0x4] sm:$0xf]
    %v2011 = vld [vmem:[#allocation7 + $0x8] sm:$0xf]
    %v2012 = vld [vmem:[#allocation7 + $0xc] sm:$0xf]
    %v2013 = vld [vmem:[#allocation7 + $0x10] sm:$0xf]
    %v2014 = vld [vmem:[#allocation7 + $0x14] sm:$0xf]
    %v2015 = vld [vmem:[#allocation7 + $0x18] sm:$0xf]
    %v2016 = vld [vmem:[#allocation7 + $0x1c] sm:$0xf]
    %v2017 = vld [vmem:[#allocation7 + $0x20] sm:$0xf]
    %v2018 = vld [vmem:[#allocation7 + $0x24] sm:$0xf]
    %v2019 = vld [vmem:[#allocation7 + $0x28] sm:$0xf]
    %v2020 = vld [vmem:[#allocation7 + $0x2c] sm:$0xf]
    %v2021 = vld [vmem:[#allocation7 + $0x30] sm:$0xf]
    %v2022 = vld [vmem:[#allocation7 + $0x34] sm:$0xf]
    %v2023 = vld [vmem:[#allocation7 + $0x38] sm:$0xf]
    %v2024 = vld [vmem:[#allocation7 + $0x3c] sm:$0xf]
    %v2025 = vld [vmem:[#allocation7 + $0x40] sm:$0xf]
    %v2026 = vld [vmem:[#allocation7 + $0x44] sm:$0xf]
    %v2027 = vld [vmem:[#allocation7 + $0x48] sm:$0xf]
    %v2028 = vld [vmem:[#allocation7 + $0x4c] sm:$0xf]
    %v2029 = vld [vmem:[#allocation7 + $0x50] sm:$0xf]
    %v2030 = vld [vmem:[#allocation7 + $0x54] sm:$0xf]
    %v2031 = vld [vmem:[#allocation7 + $0x58] sm:$0xf]
    %v2032 = vld [vmem:[#allocation7 + $0x5c] sm:$0xf]
    %v2033 = vld [vmem:[#allocation7 + $0x60] sm:$0xf]
    %v2034 = vld [vmem:[#allocation7 + $0x64] sm:$0xf]
    %v2035 = vld [vmem:[#allocation7 + $0x68] sm:$0xf]
    %v2036 = vld [vmem:[#allocation7 + $0x6c] sm:$0xf]
    %v2037 = vld [vmem:[#allocation7 + $0x70] sm:$0xf]
    %v2038 = vld [vmem:[#allocation7 + $0x74] sm:$0xf]
    %v2039 = vld [vmem:[#allocation7 + $0x78] sm:$0xf]
    %v2040 = vld [vmem:[#allocation7 + $0x7c] sm:$0xf]
    %v2042 = vlaneseq
    %v2043 = vshrl.u32 %v2042, 7
    %v2044 = vsub.s32 0, %v2043
    %v2045 = vrot.slane %v115, %v2044
    %v2079 = vunpack.c.l.b16 %v2009
    %v2080 = vunpack.c.l.b16 %v2010
    %v2081 = vunpack.c.l.b16 %v2011
    %v2082 = vunpack.c.l.b16 %v2012
    %v2083 = vunpack.c.l.b16 %v2013
    %v2084 = vunpack.c.l.b16 %v2014
    %v2085 = vunpack.c.l.b16 %v2015
    %v2086 = vunpack.c.l.b16 %v2016
    %v2087 = vunpack.c.l.b16 %v2017
    %v2088 = vunpack.c.l.b16 %v2018
    %v2089 = vunpack.c.l.b16 %v2019
    %v2090 = vunpack.c.l.b16 %v2020
    %v2091 = vunpack.c.l.b16 %v2021
    %v2092 = vunpack.c.l.b16 %v2022
    %v2093 = vunpack.c.l.b16 %v2023
    %v2094 = vunpack.c.l.b16 %v2024
    %v2095 = vunpack.c.l.b16 %v2025
    %v2096 = vunpack.c.l.b16 %v2026
    %v2097 = vunpack.c.l.b16 %v2027
    %v2098 = vunpack.c.l.b16 %v2028
    %v2099 = vunpack.c.l.b16 %v2029
    %v2100 = vunpack.c.l.b16 %v2030
    %v2101 = vunpack.c.l.b16 %v2031
    %v2102 = vunpack.c.l.b16 %v2032
    %v2103 = vunpack.c.l.b16 %v2033
    %v2104 = vunpack.c.l.b16 %v2034
    %v2105 = vunpack.c.l.b16 %v2035
    %v2106 = vunpack.c.l.b16 %v2036
    %v2107 = vunpack.c.l.b16 %v2037
    %v2108 = vunpack.c.l.b16 %v2038
    %v2109 = vunpack.c.l.b16 %v2039
    %v2110 = vunpack.c.l.b16 %v2040
    %v2111 = vpack.c.b16 %v2080, %v2079
    %v2112 = vpack.c.b16 %v2082, %v2081
    %v2113 = vpack.c.b16 %v2084, %v2083
    %v2114 = vpack.c.b16 %v2086, %v2085
    %v2115 = vpack.c.b16 %v2088, %v2087
    %v2116 = vpack.c.b16 %v2090, %v2089
    %v2117 = vpack.c.b16 %v2092, %v2091
    %v2118 = vpack.c.b16 %v2094, %v2093
    %v2119 = vpack.c.b16 %v2096, %v2095
    %v2120 = vpack.c.b16 %v2098, %v2097
    %v2121 = vpack.c.b16 %v2100, %v2099
    %v2122 = vpack.c.b16 %v2102, %v2101
    %v2123 = vpack.c.b16 %v2104, %v2103
    %v2124 = vpack.c.b16 %v2106, %v2105
    %v2125 = vpack.c.b16 %v2108, %v2107
    %v2126 = vpack.c.b16 %v2110, %v2109
    %2143 = vmatprep.subr.bf16.mxu0 0
    %2144 = vmatpush1.bf16.msra.mxu0 %v2111
    %2145 = vmatprep.subr.bf16.mxu0 0
    %2146 = vmatpush1.bf16.msra.mxu0 %v2112
    %2147 = vmatprep.subr.bf16.mxu0 0
    %2148 = vmatpush1.bf16.msra.mxu0 %v2113
    %2149 = vmatprep.subr.bf16.mxu0 0
    %2150 = vmatpush1.bf16.msra.mxu0 %v2114
    %2151 = vmatprep.subr.bf16.mxu0 0
    %2152 = vmatpush1.bf16.msra.mxu0 %v2115
    %2153 = vmatprep.subr.bf16.mxu0 0
    %2154 = vmatpush1.bf16.msra.mxu0 %v2116
    %2155 = vmatprep.subr.bf16.mxu0 0
    %2156 = vmatpush1.bf16.msra.mxu0 %v2117
    %2157 = vmatprep.subr.bf16.mxu0 0
    %2158 = vmatpush1.bf16.msra.mxu0 %v2118
    %2159 = vmatprep.subr.bf16.mxu0 0
    %2160 = vmatpush1.bf16.msra.mxu0 %v2119
    %2161 = vmatprep.subr.bf16.mxu0 0
    %2162 = vmatpush1.bf16.msra.mxu0 %v2120
    %2163 = vmatprep.subr.bf16.mxu0 0
    %2164 = vmatpush1.bf16.msra.mxu0 %v2121
    %2165 = vmatprep.subr.bf16.mxu0 0
    %2166 = vmatpush1.bf16.msra.mxu0 %v2122
    %2167 = vmatprep.subr.bf16.mxu0 0
    %2168 = vmatpush1.bf16.msra.mxu0 %v2123
    %2169 = vmatprep.subr.bf16.mxu0 0
    %2170 = vmatpush1.bf16.msra.mxu0 %v2124
    %2171 = vmatprep.subr.bf16.mxu0 0
    %2172 = vmatpush1.bf16.msra.mxu0 %v2125
    %2173 = vmatprep.subr.bf16.mxu0 0
    %2174 = vmatpush1.bf16.msra.mxu0 %v2126
    %2175 = vmatprep.mubr.bf16.mxu0 %v2008
    %2176 = vmatmul.mubr.bf16.gmra.mrb[0].mxu0 %v2007
    %v2177 = vpop.f32.mrb[0].mxu0
    %v2178 = vadd.f32 %v2045, %v2177
    %v2179 = vpop.f32.mrb[0].mxu0
    %v2180 = vpop.f32.mrb[0].mxu0
    %v2181 = vpop.f32.mrb[0].mxu0
    %2182 = vdwg.mxu0
    %v2183 = vmax.f32 %v2178, 0.0
    %v2184 = vpack.c.bf16 %v2183, %v2183
    %v2185 = vld [vmem:[#allocation9] sm:$0xf]
    %v2186 = vld [vmem:[#allocation9 + $0x4] sm:$0xf]
    %v2187 = vld [vmem:[#allocation9 + $0x8] sm:$0xf]
    %v2188 = vld [vmem:[#allocation9 + $0xc] sm:$0xf]
    %v2189 = vld [vmem:[#allocation9 + $0x10] sm:$0xf]
    %v2190 = vld [vmem:[#allocation9 + $0x14] sm:$0xf]
    %v2191 = vld [vmem:[#allocation9 + $0x18] sm:$0xf]
    %v2192 = vld [vmem:[#allocation9 + $0x1c] sm:$0xf]
    %v2193 = vld [vmem:[#allocation9 + $0x20] sm:$0xf]
    %v2194 = vld [vmem:[#allocation9 + $0x24] sm:$0xf]
    %v2195 = vld [vmem:[#allocation9 + $0x28] sm:$0xf]
    %v2196 = vld [vmem:[#allocation9 + $0x2c] sm:$0xf]
    %v2197 = vld [vmem:[#allocation9 + $0x30] sm:$0xf]
    %v2198 = vld [vmem:[#allocation9 + $0x34] sm:$0xf]
    %v2199 = vld [vmem:[#allocation9 + $0x38] sm:$0xf]
    %v2200 = vld [vmem:[#allocation9 + $0x3c] sm:$0xf]
    %v2202 = vlaneseq
    %v2203 = vshrl.u32 %v2202, 7
    %v2204 = vsub.s32 0, %v2203
    %v2205 = vrot.slane %v116, %v2204
    %v2223 = vunpack.c.l.b16 %v2185
    %v2224 = vunpack.c.l.b16 %v2186
    %v2225 = vunpack.c.l.b16 %v2187
    %v2226 = vunpack.c.l.b16 %v2188
    %v2227 = vunpack.c.l.b16 %v2189
    %v2228 = vunpack.c.l.b16 %v2190
    %v2229 = vunpack.c.l.b16 %v2191
    %v2230 = vunpack.c.l.b16 %v2192
    %v2231 = vunpack.c.l.b16 %v2193
    %v2232 = vunpack.c.l.b16 %v2194
    %v2233 = vunpack.c.l.b16 %v2195
    %v2234 = vunpack.c.l.b16 %v2196
    %v2235 = vunpack.c.l.b16 %v2197
    %v2236 = vunpack.c.l.b16 %v2198
    %v2237 = vunpack.c.l.b16 %v2199
    %v2238 = vunpack.c.l.b16 %v2200
    %v2239 = vpack.c.b16 %v2224, %v2223
    %v2240 = vpack.c.b16 %v2226, %v2225
    %v2241 = vpack.c.b16 %v2228, %v2227
    %v2242 = vpack.c.b16 %v2230, %v2229
    %v2243 = vpack.c.b16 %v2232, %v2231
    %v2244 = vpack.c.b16 %v2234, %v2233
    %v2245 = vpack.c.b16 %v2236, %v2235
    %v2246 = vpack.c.b16 %v2238, %v2237
    %2255 = vmatprep.subr.bf16.mxu0 0
    %2256 = vmatpush1.bf16.msra.mxu0 %v2239
    %2257 = vmatprep.subr.bf16.mxu0 0
    %2258 = vmatpush1.bf16.msra.mxu0 %v2240
    %2259 = vmatprep.subr.bf16.mxu0 0
    %2260 = vmatpush1.bf16.msra.mxu0 %v2241
    %2261 = vmatprep.subr.bf16.mxu0 0
    %2262 = vmatpush1.bf16.msra.mxu0 %v2242
    %2263 = vmatprep.subr.bf16.mxu0 0
    %2264 = vmatpush1.bf16.msra.mxu0 %v2243
    %2265 = vmatprep.subr.bf16.mxu0 0
    %2266 = vmatpush1.bf16.msra.mxu0 %v2244
    %2267 = vmatprep.subr.bf16.mxu0 0
    %2268 = vmatpush1.bf16.msra.mxu0 %v2245
    %2269 = vmatprep.subr.bf16.mxu0 0
    %2270 = vmatpush1.bf16.msra.mxu0 %v2246
    %2271 = vmatprep.subr.bf16.mxu0 0
    %2272 = vmatpush1.bf16.msra.mxu0 0
    %2273 = vmatprep.subr.bf16.mxu0 0
    %2274 = vmatpush1.bf16.msra.mxu0 0
    %2275 = vmatprep.subr.bf16.mxu0 0
    %2276 = vmatpush1.bf16.msra.mxu0 0
    %2277 = vmatprep.subr.bf16.mxu0 0
    %2278 = vmatpush1.bf16.msra.mxu0 0
    %2279 = vmatprep.subr.bf16.mxu0 0
    %2280 = vmatpush1.bf16.msra.mxu0 0
    %2281 = vmatprep.subr.bf16.mxu0 0
    %2282 = vmatpush1.bf16.msra.mxu0 0
    %2283 = vmatprep.subr.bf16.mxu0 0
    %2284 = vmatpush1.bf16.msra.mxu0 0
    %2285 = vmatprep.subr.bf16.mxu0 0
    %2286 = vmatpush1.bf16.msra.mxu0 0
    %2287 = vmatprep.mubr.bf16.mxu0 0
    %2288 = vmatmul.mubr.bf16.gmra.mrb[0].mxu0 %v2184
    %v2289 = vpop.f32.mrb[0].mxu0
    %v2290 = vadd.f32 %v2205, %v2289
    %v2291 = vpop.f32.mrb[0].mxu0
    %v2292 = vpop.f32.mrb[0].mxu0
    %v2293 = vpop.f32.mrb[0].mxu0
    %2294 = vdwg.mxu0
    %v2295 = vmax.f32 %v2290, 0.0
    %v2296 = vpack.c.bf16 %v2295, %v2295
    %v2297 = vld [vmem:[#allocation10] sm:$0xf]
    %v2298 = vld [vmem:[#allocation10 + $0x4] sm:$0xf]
    %v2299 = vld [vmem:[#allocation10 + $0x8] sm:$0xf]
    %v2300 = vld [vmem:[#allocation10 + $0xc] sm:$0xf]
    %v2301 = vld [vmem:[#allocation10 + $0x10] sm:$0xf]
    %v2302 = vld [vmem:[#allocation10 + $0x14] sm:$0xf]
    %v2303 = vld [vmem:[#allocation10 + $0x18] sm:$0xf]
    %v2304 = vld [vmem:[#allocation10 + $0x1c] sm:$0xf]
    %v2305 = vld [vmem:[#allocation10 + $0x20] sm:$0xf]
    %v2306 = vld [vmem:[#allocation10 + $0x24] sm:$0xf]
    %v2307 = vld [vmem:[#allocation10 + $0x28] sm:$0xf]
    %v2308 = vld [vmem:[#allocation10 + $0x2c] sm:$0xf]
    %v2309 = vld [vmem:[#allocation10 + $0x30] sm:$0xf]
    %v2310 = vld [vmem:[#allocation10 + $0x34] sm:$0xf]
    %v2311 = vld [vmem:[#allocation10 + $0x38] sm:$0xf]
    %v2312 = vld [vmem:[#allocation10 + $0x3c] sm:$0xf]
    %v2314 = vlaneseq
    %v2315 = vshrl.u32 %v2314, 7
    %v2316 = vsub.s32 0, %v2315
    %v2317 = vrot.slane %v117, %v2316
    %v2335 = vunpack.c.l.b16 %v2297
    %v2336 = vunpack.c.l.b16 %v2298
    %v2337 = vunpack.c.l.b16 %v2299
    %v2338 = vunpack.c.l.b16 %v2300
    %v2339 = vunpack.c.l.b16 %v2301
    %v2340 = vunpack.c.l.b16 %v2302
    %v2341 = vunpack.c.l.b16 %v2303
    %v2342 = vunpack.c.l.b16 %v2304
    %v2343 = vunpack.c.l.b16 %v2305
    %v2344 = vunpack.c.l.b16 %v2306
    %v2345 = vunpack.c.l.b16 %v2307
    %v2346 = vunpack.c.l.b16 %v2308
    %v2347 = vunpack.c.l.b16 %v2309
    %v2348 = vunpack.c.l.b16 %v2310
    %v2349 = vunpack.c.l.b16 %v2311
    %v2350 = vunpack.c.l.b16 %v2312
    %v2351 = vpack.c.b16 %v2336, %v2335
    %v2352 = vpack.c.b16 %v2338, %v2337
    %v2353 = vpack.c.b16 %v2340, %v2339
    %v2354 = vpack.c.b16 %v2342, %v2341
    %v2355 = vpack.c.b16 %v2344, %v2343
    %v2356 = vpack.c.b16 %v2346, %v2345
    %v2357 = vpack.c.b16 %v2348, %v2347
    %v2358 = vpack.c.b16 %v2350, %v2349
    %2367 = vmatprep.subr.bf16.mxu0 0
    %2368 = vmatpush1.bf16.msra.mxu0 %v2351
    %2369 = vmatprep.subr.bf16.mxu0 0
    %2370 = vmatpush1.bf16.msra.mxu0 %v2352
    %2371 = vmatprep.subr.bf16.mxu0 0
    %2372 = vmatpush1.bf16.msra.mxu0 %v2353
    %2373 = vmatprep.subr.bf16.mxu0 0
    %2374 = vmatpush1.bf16.msra.mxu0 %v2354
    %2375 = vmatprep.subr.bf16.mxu0 0
    %2376 = vmatpush1.bf16.msra.mxu0 %v2355
    %2377 = vmatprep.subr.bf16.mxu0 0
    %2378 = vmatpush1.bf16.msra.mxu0 %v2356
    %2379 = vmatprep.subr.bf16.mxu0 0
    %2380 = vmatpush1.bf16.msra.mxu0 %v2357
    %2381 = vmatprep.subr.bf16.mxu0 0
    %2382 = vmatpush1.bf16.msra.mxu0 %v2358
    %2383 = vmatprep.subr.bf16.mxu0 0
    %2384 = vmatpush1.bf16.msra.mxu0 0
    %2385 = vmatprep.subr.bf16.mxu0 0
    %2386 = vmatpush1.bf16.msra.mxu0 0
    %2387 = vmatprep.subr.bf16.mxu0 0
    %2388 = vmatpush1.bf16.msra.mxu0 0
    %2389 = vmatprep.subr.bf16.mxu0 0
    %2390 = vmatpush1.bf16.msra.mxu0 0
    %2391 = vmatprep.subr.bf16.mxu0 0
    %2392 = vmatpush1.bf16.msra.mxu0 0
    %2393 = vmatprep.subr.bf16.mxu0 0
    %2394 = vmatpush1.bf16.msra.mxu0 0
    %2395 = vmatprep.subr.bf16.mxu0 0
    %2396 = vmatpush1.bf16.msra.mxu0 0
    %2397 = vmatprep.subr.bf16.mxu0 0
    %2398 = vmatpush1.bf16.msra.mxu0 0
    %2399 = vmatprep.mubr.bf16.mxu0 0
    %2400 = vmatmul.mubr.bf16.gmra.mrb[0].mxu0 %v2296
    %v2401 = vpop.f32.mrb[0].mxu0
    %v2402 = vadd.f32 %v2317, %v2401
    %v2403 = vpop.f32.mrb[0].mxu0
    %v2404 = vpop.f32.mrb[0].mxu0
    %v2405 = vpop.f32.mrb[0].mxu0
    %2406 = vdwg.mxu0
    %v2407 = vlaneseq
    %v2408 = vand.u32 %v2407, 127
    %vm2409 = vcmp.lt.s32.totalorder %v2408, 7
    %v2410 = vsel %vm2409, %v2402, -1e+30
    %2411 = vmax.xlane.f32.xlu0 %v2410
    %v2412 = vpop.xlane.xlu0 %2411
    %v2413 = vsub.f32 %v2410, %v2412
    %v2414 = vmul.f32 %v2413, 1.442695
    %v2415 = vpow.pop %v2414
    %v2416 = vsel %vm2409, %v2415, 0.0
    %2417 = vadd.xlane.f32.xlu0 %v2416
    %v2418 = vpop.xlane.xlu0 %2417
    %v2419 = vrcp.pop %v2418
    %v2420 = vmul.f32 %v2418, %v2419
    %v2421 = vsub.f32 2.0, %v2420
    %v2422 = vmul.f32 %v2419, %v2421
    %v2423 = vmul.f32 %v2416, %v2422
    %v2424 = vmax.f32 %v2402, 0.0
    %v2426 = vlaneseq
    %v2427 = vshrl.u32 %v2426, 7
    %v2428 = vsub.s32 0, %v2427
    %v2429 = vrot.slane %v118, %v2428
    %v2431 = vmul.f32 %v2424, %v2429
    %2432 = vadd.xlane.f32.xlu0 %v2431
    %v2433 = vpop.xlane.xlu0 %2432
    %v2435 = vlaneseq
    %v2436 = vshrl.u32 %v2435, 7
    %v2437 = vsub.s32 0, %v2436
    %v2438 = vrot.slane %v119, %v2437
    %v2440 = vadd.f32 %v2433, %v2438
    %vm2441 = vcmp.eq.s32.totalorder %v2408, 7
    %2443 = vset.pattern.permute.xlu0 0
    %2444 = vperm.xlu0 %2443, %v2440
    %v2445 = vpop.permute.xlu0 %2444
    %v2447 = vsel %vm2441, %v2445, 0.0
    %v2448 = vadd.f32 %v2423, %v2447
    %2449 = vst [vmem:[%s8] sm:$0xff] %v2448
    // Predicated region
    $region58: #{actor_critic_forward.1} parent=1 // pred_check
      _
    $region59: #{actor_critic_forward.1} parent=1 // pred_check_branch
      %2451 = sbr.rel (0) target = $region61
    $region60: #{actor_critic_forward.1} parent=1 // pred_region
      _
    $region61: #{actor_critic_forward.1} parent=1 // pred_fallthru
      _
    // Predicated region
    $region62: #{actor_critic_forward.1} parent=1 // pred_check
      _
    $region63: #{actor_critic_forward.1} parent=1 // pred_check_branch
      %2453 = sbr.rel (0) target = $region65
    $region64: #{actor_critic_forward.1} parent=1 // pred_region
      _
    $region65: #{actor_critic_forward.1} parent=1 // pred_fallthru
      _
    %2454 = vsyncpa [#allocation3], 1
    %2455 = vsyncpa [#allocation5], 1
    %2456 = vsyncpa [#allocation8], 1
    %2457 = vsyncpa [#allocation11], 1

</llo_original>
